<compile_context>
chip_gen: v7x
topology: tpu7x:2x2x1
jax: 0.10.0
libtpu: 0.0.40
codegen_flags: <defaults>
</compile_context>

<pallas_src>
import functools

import jax
import jax.numpy as jnp
from jax.experimental import pallas as pl
from jax.experimental.pallas import tpu as pltpu


# ---------------------------------------------------------------------------
# Kernel
# ---------------------------------------------------------------------------
def _bilstm_maxpool_kernel(x_ref, pen_ref, wih_ref, whh_ref, b_ref,
                           out_ref, gx_ref, *, hidden):
    T, TN, E2 = x_ref.shape
    H = hidden
    H2, H4, H6, H8 = 2 * H, 4 * H, 6 * H, 8 * H

    # --- hoisted input projection: one batched MXU matmul for all T steps and
    #     both directions, biases folded in (not re-added per step). -----------
    x_flat = x_ref[...].reshape(T * TN, E2)
    gx = jnp.dot(x_flat, wih_ref[...], preferred_element_type=jnp.float32) + b_ref[...]
    gx_ref[...] = gx.reshape(T, TN, H8)

    whh = whh_ref[...]

    h0 = jnp.zeros((TN, H2), jnp.float32)
    c0 = jnp.zeros((TN, H2), jnp.float32)
    mx0 = jnp.full((TN, H2), -jnp.inf, jnp.float32)

    # --- fused forward + reverse recurrence (fully unrolled, T is static) -----
    # Gate column order: (i_f, i_r, f_f, f_r, o_f, o_r, g_f, g_r)
    # State column order: (h_f | h_r), (c_f | c_r)
    def body(t, carry):
        h, c, mx = carry
        gates = gx_ref[t] + jnp.dot(h, whh, preferred_element_type=jnp.float32)
        sig = jax.nn.sigmoid(gates[:, :H6])      # i, f, o for both directions
        g = jnp.tanh(gates[:, H6:])              # g for both directions
        i = sig[:, :H2]
        f = sig[:, H2:H4]
        o = sig[:, H4:]
        c = f * c + i * g
        h = o * jnp.tanh(c)
        mx = jnp.maximum(mx, h - pen_ref[t])
        return h, c, mx

    _, _, mx = jax.lax.fori_loop(0, T, body, (h0, c0, mx0), unroll=True)

    # single lane-contiguous store: [N, 2H] = [max_fwd | max_rev]
    out_ref[...] = mx


# ---------------------------------------------------------------------------
# Wrapper: weight / gate packing + pallas_call
# ---------------------------------------------------------------------------
def _pack_bilstm_weights(params):
    """Pack per-direction PyTorch-ordered (i,f,g,o) weights into combined
    matrices whose 8H columns are ordered (i_f,i_r,f_f,f_r,o_f,o_r,g_f,g_r)."""
    H = params["whh_f"].shape[0]

    def gates_ifog(w):
        # split [.., 4H] (torch order i,f,g,o) and reorder to (i, f, o, g)
        return (w[..., 0 * H:1 * H], w[..., 1 * H:2 * H],
                w[..., 3 * H:4 * H], w[..., 2 * H:3 * H])

    def interleave(parts_f, parts_r):
        out = []
        for pf, pr in zip(parts_f, parts_r):
            out.append(pf)
            out.append(pr)
        return jnp.concatenate(out, axis=-1)

    wf, wr = gates_ifog(params["wih_f"]), gates_ifog(params["wih_r"])
    uf, ur = gates_ifog(params["whh_f"]), gates_ifog(params["whh_r"])
    bf, br = gates_ifog(params["b_f"]), gates_ifog(params["b_r"])

    zw = tuple(jnp.zeros_like(p) for p in wf)   # [E, H] zeros
    zu = tuple(jnp.zeros_like(p) for p in uf)   # [H, H] zeros

    # [2E, 8H]: rows 0:E drive the forward gate columns, rows E:2E the reverse ones.
    wih_comb = jnp.concatenate([interleave(wf, zw), interleave(zw, wr)], axis=0)
    # [2H, 8H]: rows 0:H are h_fwd -> fwd columns, rows H:2H are h_rev -> rev columns.
    whh_comb = jnp.concatenate([interleave(uf, zu), interleave(zu, ur)], axis=0)
    # [1, 8H]
    b_comb = interleave(bf, br)
    return wih_comb, whh_comb, b_comb


def _pick_batch_tile(n, cap=256):
    if n <= cap:
        return n
    t = cap - (cap % 8)
    while t >= 8:
        if n % t == 0:
            return t
        t -= 8
    return n


def bilstm_maxpool_forward(batch_char, batch_len, mask, params, *, batch_tile=None):
    del batch_len  # unused (the torch forward never packs the sequence)

    # glue in plain JAX: embedding gather, layout transpose, weight/gate packing
    emb = jnp.take(params["embedding"], batch_char, axis=0).astype(jnp.float32)  # [N, T, E]
    N, T, E = emb.shape
    H = params["whh_f"].shape[0]

    x_tm = jnp.transpose(emb, (1, 0, 2))                                 # [T, N, E]
    # fused step t consumes x[t] (fwd chain) and x[T-1-t] (rev chain)
    x_comb = jnp.concatenate([x_tm, x_tm[::-1]], axis=-1)                # [T, N, 2E]

    mask_tm = jnp.transpose(mask.astype(jnp.float32), (1, 0))            # [T, N]
    pen = ((1.0 - mask_tm) * jnp.float32(1e8))[:, :, None]               # [T, N, 1]
    pen_comb = jnp.concatenate(
        [jnp.broadcast_to(pen, (T, N, H)),
         jnp.broadcast_to(pen[::-1], (T, N, H))], axis=-1)               # [T, N, 2H]

    wih_comb, whh_comb, b_comb = _pack_bilstm_weights(params)

    if batch_tile is None:
        batch_tile = _pick_batch_tile(N)
    num_tiles = N // batch_tile

    kernel = functools.partial(_bilstm_maxpool_kernel, hidden=H)

    grid_spec = pltpu.PrefetchScalarGridSpec(
        num_scalar_prefetch=0,
        grid=(num_tiles,),
        in_specs=[
            pl.BlockSpec((T, batch_tile, 2 * E), lambda i: (0, i, 0)),   # x_comb
            pl.BlockSpec((T, batch_tile, 2 * H), lambda i: (0, i, 0)),   # pen_comb
            pl.BlockSpec((2 * E, 8 * H), lambda i: (0, 0)),              # W_ih combined
            pl.BlockSpec((2 * H, 8 * H), lambda i: (0, 0)),              # W_hh combined
            pl.BlockSpec((1, 8 * H), lambda i: (0, 0)),                  # bias combined
        ],
        out_specs=pl.BlockSpec((batch_tile, 2 * H), lambda i: (i, 0)),
        scratch_shapes=[pltpu.VMEM((T, batch_tile, 8 * H), jnp.float32)],
    )

    return pl.pallas_call(
        kernel,
        out_shape=jax.ShapeDtypeStruct((N, 2 * H), jnp.float32),
        grid_spec=grid_spec,
        compiler_params=pltpu.CompilerParams(
            dimension_semantics=("parallel",)),
    )(x_comb, pen_comb, wih_comb, whh_comb, b_comb)


# ---------------------------------------------------------------------------
# Parameter init (mirrors the torch module) and pure-JAX reference
# ---------------------------------------------------------------------------
def init_params(key, char_alphabet_size, char_emb_dim, hidden_dim):
    H = hidden_dim // 2
    ks = jax.random.split(key, 10)
    ortho = jax.nn.initializers.orthogonal()

    scale = jnp.sqrt(3.0 / char_emb_dim)
    embedding = jax.random.uniform(ks[0], (char_alphabet_size, char_emb_dim),
                                   jnp.float32, -scale, scale)

    # PyTorch weights are [4H, E] / [4H, H]; pre-transpose for x @ W layout.
    wih_f = ortho(ks[1], (4 * H, char_emb_dim), jnp.float32).T
    whh_f = ortho(ks[2], (4 * H, H), jnp.float32).T
    wih_r = ortho(ks[3], (4 * H, char_emb_dim), jnp.float32).T
    whh_r = ortho(ks[4], (4 * H, H), jnp.float32).T

    bound = 1.0 / jnp.sqrt(H)
    b_f = (jax.random.uniform(ks[5], (1, 4 * H), jnp.float32, -bound, bound)
           + jax.random.uniform(ks[6], (1, 4 * H), jnp.float32, -bound, bound))
    b_r = (jax.random.uniform(ks[7], (1, 4 * H), jnp.float32, -bound, bound)
           + jax.random.uniform(ks[8], (1, 4 * H), jnp.float32, -bound, bound))

    return dict(embedding=embedding, wih_f=wih_f, whh_f=whh_f, b_f=b_f,
                wih_r=wih_r, whh_r=whh_r, b_r=b_r)


def reference_forward(batch_char, mask, params):
    """Pure-JAX reference of the same forward pass (for correctness check)."""
    emb = jnp.take(params["embedding"], batch_char, axis=0).astype(jnp.float32)
    H = params["whh_f"].shape[0]

    def run_dir(x, wih, whh, b, reverse):
        def step(carry, x_t):
            h, c = carry
            gates = x_t @ wih + h @ whh + b
            i = jax.nn.sigmoid(gates[:, :H])
            f = jax.nn.sigmoid(gates[:, H:2 * H])
            g = jnp.tanh(gates[:, 2 * H:3 * H])
            o = jax.nn.sigmoid(gates[:, 3 * H:])
            c = f * c + i * g
            h = o * jnp.tanh(c)
            return (h, c), h

        N = x.shape[0]
        xs = jnp.transpose(x, (1, 0, 2))
        if reverse:
            xs = xs[::-1]
        (_, _), hs = jax.lax.scan(step, (jnp.zeros((N, H)), jnp.zeros((N, H))), xs)
        if reverse:
            hs = hs[::-1]
        return jnp.transpose(hs, (1, 0, 2))

    hf = run_dir(emb, params["wih_f"], params["whh_f"], params["b_f"][0], False)
    hr = run_dir(emb, params["wih_r"], params["whh_r"], params["b_r"][0], True)
    feat = jnp.concatenate([hf, hr], axis=-1)
    feat = feat - (1.0 - mask[:, :, None].astype(feat.dtype)) * 1e8
    return jnp.max(feat, axis=1)


if __name__ == "__main__":
    # Small, module-consistent shapes.
    N, T = 8, 8                 # node_num, seq_len
    char_emb_dim = 32
    hidden_dim = 64             # lstm_hidden = 32, bidirectional -> 64
    char_alphabet_size = 50

    key = jax.random.PRNGKey(0)
    kp, kc, kl = jax.random.split(key, 3)

    params = init_params(kp, char_alphabet_size, char_emb_dim, hidden_dim)

    batch_char = jax.random.randint(kc, (N, T), 0, char_alphabet_size, dtype=jnp.int32)
    batch_len = jax.random.randint(kl, (N,), 1, T + 1, dtype=jnp.int32)
    mask = (jnp.arange(T)[None, :] < batch_len[:, None]).astype(jnp.float32)  # [N, T]

    out = bilstm_maxpool_forward(batch_char, batch_len, mask, params)
    out = jax.block_until_ready(out)

    ref = reference_forward(batch_char, mask, params)
    assert out.shape == (N, hidden_dim)
    assert jnp.max(jnp.abs(out - ref)) < 1e-4, "Pallas kernel mismatch vs reference"

    print("KERNEL_OK")
</pallas_src>

<mosaic_0001>
module attributes {stable_mosaic.version = 11 : i64} {
  func.func @_bilstm_maxpool_kernel(%arg0: i32, %arg1: memref<8x8x64xf32, #tpu.memory_space<vmem>>, %arg2: memref<8x8x64xf32, #tpu.memory_space<vmem>>, %arg3: memref<64x256xf32, #tpu.memory_space<vmem>>, %arg4: memref<64x256xf32, #tpu.memory_space<vmem>>, %arg5: memref<1x256xf32, #tpu.memory_space<vmem>>, %arg6: memref<8x64xf32, #tpu.memory_space<vmem>>, %arg7: memref<8x8x256xf32, #tpu.memory_space<vmem>>) attributes {dimension_semantics = [#tpu.dimension_semantics<parallel>], iteration_bounds = array<i64: 1>, scalar_prefetch = 0 : i64, scratch_operands = 1 : i64, tpu.core_type = #tpu.core_type<tc>, window_params = [{transform_indices = @transform_0, window_bounds = array<i64: 8, 8, 64>}, {transform_indices = @transform_1, window_bounds = array<i64: 8, 8, 64>}, {pipeline_mode = #tpu.pipeline_mode<synchronous>, transform_indices = @transform_2, window_bounds = array<i64: 64, 256>}, {pipeline_mode = #tpu.pipeline_mode<synchronous>, transform_indices = @transform_3, window_bounds = array<i64: 64, 256>}, {pipeline_mode = #tpu.pipeline_mode<synchronous>, transform_indices = @transform_4, window_bounds = array<i64: 1, 256>}, {transform_indices = @transform_5, window_bounds = array<i64: 8, 64>}]} {
    %c0 = arith.constant 0 : index
    %c0_0 = arith.constant 0 : index
    %c0_1 = arith.constant 0 : index
    %0 = vector.load %arg1[%c0, %c0_0, %c0_1] : memref<8x8x64xf32, #tpu.memory_space<vmem>>, vector<8x8x64xf32>
    %1 = vector.shape_cast %0 : vector<8x8x64xf32> to vector<64x64xf32>
    %c0_2 = arith.constant 0 : index
    %c0_3 = arith.constant 0 : index
    %2 = vector.load %arg3[%c0_2, %c0_3] : memref<64x256xf32, #tpu.memory_space<vmem>>, vector<64x256xf32>
    %cst = arith.constant dense<0.000000e+00> : vector<64x256xf32>
    %3 = tpu.matmul %1, %2, %cst {dimension_numbers = #tpu.dot_dimension_numbers<[1], [0], [0], [1], [0, 0, 1, 1], [], []>} : vector<64x64xf32>, vector<64x256xf32>, vector<64x256xf32> -> vector<64x256xf32>
    %c0_4 = arith.constant 0 : index
    %c0_5 = arith.constant 0 : index
    %4 = vector.load %arg5[%c0_4, %c0_5] : memref<1x256xf32, #tpu.memory_space<vmem>>, vector<1x256xf32>
    %5 = vector.broadcast %4 : vector<1x256xf32> to vector<64x256xf32>
    %6 = arith.addf %3, %5 : vector<64x256xf32>
    %7 = vector.shape_cast %6 : vector<64x256xf32> to vector<8x8x256xf32>
    %c0_6 = arith.constant 0 : index
    %c0_7 = arith.constant 0 : index
    %c0_8 = arith.constant 0 : index
    %8 = vector.load %arg7[%c0_6, %c0_7, %c0_8] : memref<8x8x256xf32, #tpu.memory_space<vmem>>, vector<8x8x256xf32>
    tpu.vector_store %arg7[%c0_6, %c0_7, %c0_8], %7 {strides = array<i32>} : memref<8x8x256xf32, #tpu.memory_space<vmem>>, vector<8x8x256xf32>,
    %c0_9 = arith.constant 0 : index
    %c0_10 = arith.constant 0 : index
    %9 = vector.load %arg4[%c0_9, %c0_10] : memref<64x256xf32, #tpu.memory_space<vmem>>, vector<64x256xf32>
    %cst_11 = arith.constant 0.000000e+00 : f32
    %10 = vector.broadcast %cst_11 : f32 to vector<8x64xf32>
    %cst_12 = arith.constant 0.000000e+00 : f32
    %11 = vector.broadcast %cst_12 : f32 to vector<8x64xf32>
    %cst_13 = arith.constant 0xFF800000 : f32
    %12 = vector.broadcast %cst_13 : f32 to vector<8x64xf32>
    %c0_i32 = arith.constant 0 : i32
    %13 = arith.index_cast %c0_i32 : i32 to index
    %c0_14 = arith.constant 0 : index
    %c0_15 = arith.constant 0 : index
    %14 = vector.load %arg7[%13, %c0_14, %c0_15] : memref<8x8x256xf32, #tpu.memory_space<vmem>>, vector<1x8x256xf32>
    %15 = vector.shape_cast %14 : vector<1x8x256xf32> to vector<8x256xf32>
    %cst_16 = arith.constant dense<0.000000e+00> : vector<8x256xf32>
    %16 = tpu.matmul %10, %9, %cst_16 {dimension_numbers = #tpu.dot_dimension_numbers<[1], [0], [0], [1], [0, 0, 1, 1], [], []>} : vector<8x64xf32>, vector<64x256xf32>, vector<8x256xf32> -> vector<8x256xf32>
    %17 = arith.addf %15, %16 : vector<8x256xf32>
    %18 = vector.extract_strided_slice %17 {offsets = [0, 0], sizes = [8, 192], strides = [1, 1]} : vector<8x256xf32> to vector<8x192xf32>
    %19 = arith.negf %18 : vector<8x192xf32>
    %20 = math.exp %19 : vector<8x192xf32>
    %cst_17 = arith.constant 1.000000e+00 : f32
    %21 = vector.broadcast %cst_17 : f32 to vector<8x192xf32>
    %22 = arith.addf %21, %20 : vector<8x192xf32>
    %23 = arith.divf %21, %22 : vector<8x192xf32>
    %24 = vector.extract_strided_slice %17 {offsets = [0, 192], sizes = [8, 64], strides = [1, 1]} : vector<8x256xf32> to vector<8x64xf32>
    %25 = math.tanh %24 : vector<8x64xf32>
    %26 = vector.extract_strided_slice %23 {offsets = [0, 0], sizes = [8, 64], strides = [1, 1]} : vector<8x192xf32> to vector<8x64xf32>
    %27 = vector.extract_strided_slice %23 {offsets = [0, 64], sizes = [8, 64], strides = [1, 1]} : vector<8x192xf32> to vector<8x64xf32>
    %28 = vector.extract_strided_slice %23 {offsets = [0, 128], sizes = [8, 64], strides = [1, 1]} : vector<8x192xf32> to vector<8x64xf32>
    %29 = arith.mulf %27, %11 : vector<8x64xf32>
    %30 = arith.mulf %26, %25 : vector<8x64xf32>
    %31 = arith.addf %29, %30 : vector<8x64xf32>
    %32 = math.tanh %31 : vector<8x64xf32>
    %33 = arith.mulf %28, %32 : vector<8x64xf32>
    %34 = arith.index_cast %c0_i32 : i32 to index
    %c0_18 = arith.constant 0 : index
    %c0_19 = arith.constant 0 : index
    %35 = vector.load %arg2[%34, %c0_18, %c0_19] : memref<8x8x64xf32, #tpu.memory_space<vmem>>, vector<1x8x64xf32>
    %36 = vector.shape_cast %35 : vector<1x8x64xf32> to vector<8x64xf32>
    %37 = arith.subf %33, %36 : vector<8x64xf32>
    %38 = arith.maximumf %12, %37 : vector<8x64xf32>
    %c1_i32 = arith.constant 1 : i32
    %39 = arith.index_cast %c1_i32 : i32 to index
    %c0_20 = arith.constant 0 : index
    %c0_21 = arith.constant 0 : index
    %40 = vector.load %arg7[%39, %c0_20, %c0_21] : memref<8x8x256xf32, #tpu.memory_space<vmem>>, vector<1x8x256xf32>
    %41 = vector.shape_cast %40 : vector<1x8x256xf32> to vector<8x256xf32>
    %cst_22 = arith.constant dense<0.000000e+00> : vector<8x256xf32>
    %42 = tpu.matmul %33, %9, %cst_22 {dimension_numbers = #tpu.dot_dimension_numbers<[1], [0], [0], [1], [0, 0, 1, 1], [], []>} : vector<8x64xf32>, vector<64x256xf32>, vector<8x256xf32> -> vector<8x256xf32>
    %43 = arith.addf %41, %42 : vector<8x256xf32>
    %44 = vector.extract_strided_slice %43 {offsets = [0, 0], sizes = [8, 192], strides = [1, 1]} : vector<8x256xf32> to vector<8x192xf32>
    %45 = arith.negf %44 : vector<8x192xf32>
    %46 = math.exp %45 : vector<8x192xf32>
    %cst_23 = arith.constant 1.000000e+00 : f32
    %47 = vector.broadcast %cst_23 : f32 to vector<8x192xf32>
    %48 = arith.addf %47, %46 : vector<8x192xf32>
    %49 = arith.divf %47, %48 : vector<8x192xf32>
    %50 = vector.extract_strided_slice %43 {offsets = [0, 192], sizes = [8, 64], strides = [1, 1]} : vector<8x256xf32> to vector<8x64xf32>
    %51 = math.tanh %50 : vector<8x64xf32>
    %52 = vector.extract_strided_slice %49 {offsets = [0, 0], sizes = [8, 64], strides = [1, 1]} : vector<8x192xf32> to vector<8x64xf32>
    %53 = vector.extract_strided_slice %49 {offsets = [0, 64], sizes = [8, 64], strides = [1, 1]} : vector<8x192xf32> to vector<8x64xf32>
    %54 = vector.extract_strided_slice %49 {offsets = [0, 128], sizes = [8, 64], strides = [1, 1]} : vector<8x192xf32> to vector<8x64xf32>
    %55 = arith.mulf %53, %31 : vector<8x64xf32>
    %56 = arith.mulf %52, %51 : vector<8x64xf32>
    %57 = arith.addf %55, %56 : vector<8x64xf32>
    %58 = math.tanh %57 : vector<8x64xf32>
    %59 = arith.mulf %54, %58 : vector<8x64xf32>
    %60 = arith.index_cast %c1_i32 : i32 to index
    %c0_24 = arith.constant 0 : index
    %c0_25 = arith.constant 0 : index
    %61 = vector.load %arg2[%60, %c0_24, %c0_25] : memref<8x8x64xf32, #tpu.memory_space<vmem>>, vector<1x8x64xf32>
    %62 = vector.shape_cast %61 : vector<1x8x64xf32> to vector<8x64xf32>
    %63 = arith.subf %59, %62 : vector<8x64xf32>
    %64 = arith.maximumf %38, %63 : vector<8x64xf32>
    %c2_i32 = arith.constant 2 : i32
    %65 = arith.index_cast %c2_i32 : i32 to index
    %c0_26 = arith.constant 0 : index
    %c0_27 = arith.constant 0 : index
    %66 = vector.load %arg7[%65, %c0_26, %c0_27] : memref<8x8x256xf32, #tpu.memory_space<vmem>>, vector<1x8x256xf32>
    %67 = vector.shape_cast %66 : vector<1x8x256xf32> to vector<8x256xf32>
    %cst_28 = arith.constant dense<0.000000e+00> : vector<8x256xf32>
    %68 = tpu.matmul %59, %9, %cst_28 {dimension_numbers = #tpu.dot_dimension_numbers<[1], [0], [0], [1], [0, 0, 1, 1], [], []>} : vector<8x64xf32>, vector<64x256xf32>, vector<8x256xf32> -> vector<8x256xf32>
    %69 = arith.addf %67, %68 : vector<8x256xf32>
    %70 = vector.extract_strided_slice %69 {offsets = [0, 0], sizes = [8, 192], strides = [1, 1]} : vector<8x256xf32> to vector<8x192xf32>
    %71 = arith.negf %70 : vector<8x192xf32>
    %72 = math.exp %71 : vector<8x192xf32>
    %cst_29 = arith.constant 1.000000e+00 : f32
    %73 = vector.broadcast %cst_29 : f32 to vector<8x192xf32>
    %74 = arith.addf %73, %72 : vector<8x192xf32>
    %75 = arith.divf %73, %74 : vector<8x192xf32>
    %76 = vector.extract_strided_slice %69 {offsets = [0, 192], sizes = [8, 64], strides = [1, 1]} : vector<8x256xf32> to vector<8x64xf32>
    %77 = math.tanh %76 : vector<8x64xf32>
    %78 = vector.extract_strided_slice %75 {offsets = [0, 0], sizes = [8, 64], strides = [1, 1]} : vector<8x192xf32> to vector<8x64xf32>
    %79 = vector.extract_strided_slice %75 {offsets = [0, 64], sizes = [8, 64], strides = [1, 1]} : vector<8x192xf32> to vector<8x64xf32>
    %80 = vector.extract_strided_slice %75 {offsets = [0, 128], sizes = [8, 64], strides = [1, 1]} : vector<8x192xf32> to vector<8x64xf32>
    %81 = arith.mulf %79, %57 : vector<8x64xf32>
    %82 = arith.mulf %78, %77 : vector<8x64xf32>
    %83 = arith.addf %81, %82 : vector<8x64xf32>
    %84 = math.tanh %83 : vector<8x64xf32>
    %85 = arith.mulf %80, %84 : vector<8x64xf32>
    %86 = arith.index_cast %c2_i32 : i32 to index
    %c0_30 = arith.constant 0 : index
    %c0_31 = arith.constant 0 : index
    %87 = vector.load %arg2[%86, %c0_30, %c0_31] : memref<8x8x64xf32, #tpu.memory_space<vmem>>, vector<1x8x64xf32>
    %88 = vector.shape_cast %87 : vector<1x8x64xf32> to vector<8x64xf32>
    %89 = arith.subf %85, %88 : vector<8x64xf32>
    %90 = arith.maximumf %64, %89 : vector<8x64xf32>
    %c3_i32 = arith.constant 3 : i32
    %91 = arith.index_cast %c3_i32 : i32 to index
    %c0_32 = arith.constant 0 : index
    %c0_33 = arith.constant 0 : index
    %92 = vector.load %arg7[%91, %c0_32, %c0_33] : memref<8x8x256xf32, #tpu.memory_space<vmem>>, vector<1x8x256xf32>
    %93 = vector.shape_cast %92 : vector<1x8x256xf32> to vector<8x256xf32>
    %cst_34 = arith.constant dense<0.000000e+00> : vector<8x256xf32>
    %94 = tpu.matmul %85, %9, %cst_34 {dimension_numbers = #tpu.dot_dimension_numbers<[1], [0], [0], [1], [0, 0, 1, 1], [], []>} : vector<8x64xf32>, vector<64x256xf32>, vector<8x256xf32> -> vector<8x256xf32>
    %95 = arith.addf %93, %94 : vector<8x256xf32>
    %96 = vector.extract_strided_slice %95 {offsets = [0, 0], sizes = [8, 192], strides = [1, 1]} : vector<8x256xf32> to vector<8x192xf32>
    %97 = arith.negf %96 : vector<8x192xf32>
    %98 = math.exp %97 : vector<8x192xf32>
    %cst_35 = arith.constant 1.000000e+00 : f32
    %99 = vector.broadcast %cst_35 : f32 to vector<8x192xf32>
    %100 = arith.addf %99, %98 : vector<8x192xf32>
    %101 = arith.divf %99, %100 : vector<8x192xf32>
    %102 = vector.extract_strided_slice %95 {offsets = [0, 192], sizes = [8, 64], strides = [1, 1]} : vector<8x256xf32> to vector<8x64xf32>
    %103 = math.tanh %102 : vector<8x64xf32>
    %104 = vector.extract_strided_slice %101 {offsets = [0, 0], sizes = [8, 64], strides = [1, 1]} : vector<8x192xf32> to vector<8x64xf32>
    %105 = vector.extract_strided_slice %101 {offsets = [0, 64], sizes = [8, 64], strides = [1, 1]} : vector<8x192xf32> to vector<8x64xf32>
    %106 = vector.extract_strided_slice %101 {offsets = [0, 128], sizes = [8, 64], strides = [1, 1]} : vector<8x192xf32> to vector<8x64xf32>
    %107 = arith.mulf %105, %83 : vector<8x64xf32>
    %108 = arith.mulf %104, %103 : vector<8x64xf32>
    %109 = arith.addf %107, %108 : vector<8x64xf32>
    %110 = math.tanh %109 : vector<8x64xf32>
    %111 = arith.mulf %106, %110 : vector<8x64xf32>
    %112 = arith.index_cast %c3_i32 : i32 to index
    %c0_36 = arith.constant 0 : index
    %c0_37 = arith.constant 0 : index
    %113 = vector.load %arg2[%112, %c0_36, %c0_37] : memref<8x8x64xf32, #tpu.memory_space<vmem>>, vector<1x8x64xf32>
    %114 = vector.shape_cast %113 : vector<1x8x64xf32> to vector<8x64xf32>
    %115 = arith.subf %111, %114 : vector<8x64xf32>
    %116 = arith.maximumf %90, %115 : vector<8x64xf32>
    %c4_i32 = arith.constant 4 : i32
    %117 = arith.index_cast %c4_i32 : i32 to index
    %c0_38 = arith.constant 0 : index
    %c0_39 = arith.constant 0 : index
    %118 = vector.load %arg7[%117, %c0_38, %c0_39] : memref<8x8x256xf32, #tpu.memory_space<vmem>>, vector<1x8x256xf32>
    %119 = vector.shape_cast %118 : vector<1x8x256xf32> to vector<8x256xf32>
    %cst_40 = arith.constant dense<0.000000e+00> : vector<8x256xf32>
    %120 = tpu.matmul %111, %9, %cst_40 {dimension_numbers = #tpu.dot_dimension_numbers<[1], [0], [0], [1], [0, 0, 1, 1], [], []>} : vector<8x64xf32>, vector<64x256xf32>, vector<8x256xf32> -> vector<8x256xf32>
    %121 = arith.addf %119, %120 : vector<8x256xf32>
    %122 = vector.extract_strided_slice %121 {offsets = [0, 0], sizes = [8, 192], strides = [1, 1]} : vector<8x256xf32> to vector<8x192xf32>
    %123 = arith.negf %122 : vector<8x192xf32>
    %124 = math.exp %123 : vector<8x192xf32>
    %cst_41 = arith.constant 1.000000e+00 : f32
    %125 = vector.broadcast %cst_41 : f32 to vector<8x192xf32>
    %126 = arith.addf %125, %124 : vector<8x192xf32>
    %127 = arith.divf %125, %126 : vector<8x192xf32>
    %128 = vector.extract_strided_slice %121 {offsets = [0, 192], sizes = [8, 64], strides = [1, 1]} : vector<8x256xf32> to vector<8x64xf32>
    %129 = math.tanh %128 : vector<8x64xf32>
    %130 = vector.extract_strided_slice %127 {offsets = [0, 0], sizes = [8, 64], strides = [1, 1]} : vector<8x192xf32> to vector<8x64xf32>
    %131 = vector.extract_strided_slice %127 {offsets = [0, 64], sizes = [8, 64], strides = [1, 1]} : vector<8x192xf32> to vector<8x64xf32>
    %132 = vector.extract_strided_slice %127 {offsets = [0, 128], sizes = [8, 64], strides = [1, 1]} : vector<8x192xf32> to vector<8x64xf32>
    %133 = arith.mulf %131, %109 : vector<8x64xf32>
    %134 = arith.mulf %130, %129 : vector<8x64xf32>
    %135 = arith.addf %133, %134 : vector<8x64xf32>
    %136 = math.tanh %135 : vector<8x64xf32>
    %137 = arith.mulf %132, %136 : vector<8x64xf32>
    %138 = arith.index_cast %c4_i32 : i32 to index
    %c0_42 = arith.constant 0 : index
    %c0_43 = arith.constant 0 : index
    %139 = vector.load %arg2[%138, %c0_42, %c0_43] : memref<8x8x64xf32, #tpu.memory_space<vmem>>, vector<1x8x64xf32>
    %140 = vector.shape_cast %139 : vector<1x8x64xf32> to vector<8x64xf32>
    %141 = arith.subf %137, %140 : vector<8x64xf32>
    %142 = arith.maximumf %116, %141 : vector<8x64xf32>
    %c5_i32 = arith.constant 5 : i32
    %143 = arith.index_cast %c5_i32 : i32 to index
    %c0_44 = arith.constant 0 : index
    %c0_45 = arith.constant 0 : index
    %144 = vector.load %arg7[%143, %c0_44, %c0_45] : memref<8x8x256xf32, #tpu.memory_space<vmem>>, vector<1x8x256xf32>
    %145 = vector.shape_cast %144 : vector<1x8x256xf32> to vector<8x256xf32>
    %cst_46 = arith.constant dense<0.000000e+00> : vector<8x256xf32>
    %146 = tpu.matmul %137, %9, %cst_46 {dimension_numbers = #tpu.dot_dimension_numbers<[1], [0], [0], [1], [0, 0, 1, 1], [], []>} : vector<8x64xf32>, vector<64x256xf32>, vector<8x256xf32> -> vector<8x256xf32>
    %147 = arith.addf %145, %146 : vector<8x256xf32>
    %148 = vector.extract_strided_slice %147 {offsets = [0, 0], sizes = [8, 192], strides = [1, 1]} : vector<8x256xf32> to vector<8x192xf32>
    %149 = arith.negf %148 : vector<8x192xf32>
    %150 = math.exp %149 : vector<8x192xf32>
    %cst_47 = arith.constant 1.000000e+00 : f32
    %151 = vector.broadcast %cst_47 : f32 to vector<8x192xf32>
    %152 = arith.addf %151, %150 : vector<8x192xf32>
    %153 = arith.divf %151, %152 : vector<8x192xf32>
    %154 = vector.extract_strided_slice %147 {offsets = [0, 192], sizes = [8, 64], strides = [1, 1]} : vector<8x256xf32> to vector<8x64xf32>
    %155 = math.tanh %154 : vector<8x64xf32>
    %156 = vector.extract_strided_slice %153 {offsets = [0, 0], sizes = [8, 64], strides = [1, 1]} : vector<8x192xf32> to vector<8x64xf32>
    %157 = vector.extract_strided_slice %153 {offsets = [0, 64], sizes = [8, 64], strides = [1, 1]} : vector<8x192xf32> to vector<8x64xf32>
    %158 = vector.extract_strided_slice %153 {offsets = [0, 128], sizes = [8, 64], strides = [1, 1]} : vector<8x192xf32> to vector<8x64xf32>
    %159 = arith.mulf %157, %135 : vector<8x64xf32>
    %160 = arith.mulf %156, %155 : vector<8x64xf32>
    %161 = arith.addf %159, %160 : vector<8x64xf32>
    %162 = math.tanh %161 : vector<8x64xf32>
    %163 = arith.mulf %158, %162 : vector<8x64xf32>
    %164 = arith.index_cast %c5_i32 : i32 to index
    %c0_48 = arith.constant 0 : index
    %c0_49 = arith.constant 0 : index
    %165 = vector.load %arg2[%164, %c0_48, %c0_49] : memref<8x8x64xf32, #tpu.memory_space<vmem>>, vector<1x8x64xf32>
    %166 = vector.shape_cast %165 : vector<1x8x64xf32> to vector<8x64xf32>
    %167 = arith.subf %163, %166 : vector<8x64xf32>
    %168 = arith.maximumf %142, %167 : vector<8x64xf32>
    %c6_i32 = arith.constant 6 : i32
    %169 = arith.index_cast %c6_i32 : i32 to index
    %c0_50 = arith.constant 0 : index
    %c0_51 = arith.constant 0 : index
    %170 = vector.load %arg7[%169, %c0_50, %c0_51] : memref<8x8x256xf32, #tpu.memory_space<vmem>>, vector<1x8x256xf32>
    %171 = vector.shape_cast %170 : vector<1x8x256xf32> to vector<8x256xf32>
    %cst_52 = arith.constant dense<0.000000e+00> : vector<8x256xf32>
    %172 = tpu.matmul %163, %9, %cst_52 {dimension_numbers = #tpu.dot_dimension_numbers<[1], [0], [0], [1], [0, 0, 1, 1], [], []>} : vector<8x64xf32>, vector<64x256xf32>, vector<8x256xf32> -> vector<8x256xf32>
    %173 = arith.addf %171, %172 : vector<8x256xf32>
    %174 = vector.extract_strided_slice %173 {offsets = [0, 0], sizes = [8, 192], strides = [1, 1]} : vector<8x256xf32> to vector<8x192xf32>
    %175 = arith.negf %174 : vector<8x192xf32>
    %176 = math.exp %175 : vector<8x192xf32>
    %cst_53 = arith.constant 1.000000e+00 : f32
    %177 = vector.broadcast %cst_53 : f32 to vector<8x192xf32>
    %178 = arith.addf %177, %176 : vector<8x192xf32>
    %179 = arith.divf %177, %178 : vector<8x192xf32>
    %180 = vector.extract_strided_slice %173 {offsets = [0, 192], sizes = [8, 64], strides = [1, 1]} : vector<8x256xf32> to vector<8x64xf32>
    %181 = math.tanh %180 : vector<8x64xf32>
    %182 = vector.extract_strided_slice %179 {offsets = [0, 0], sizes = [8, 64], strides = [1, 1]} : vector<8x192xf32> to vector<8x64xf32>
    %183 = vector.extract_strided_slice %179 {offsets = [0, 64], sizes = [8, 64], strides = [1, 1]} : vector<8x192xf32> to vector<8x64xf32>
    %184 = vector.extract_strided_slice %179 {offsets = [0, 128], sizes = [8, 64], strides = [1, 1]} : vector<8x192xf32> to vector<8x64xf32>
    %185 = arith.mulf %183, %161 : vector<8x64xf32>
    %186 = arith.mulf %182, %181 : vector<8x64xf32>
    %187 = arith.addf %185, %186 : vector<8x64xf32>
    %188 = math.tanh %187 : vector<8x64xf32>
    %189 = arith.mulf %184, %188 : vector<8x64xf32>
    %190 = arith.index_cast %c6_i32 : i32 to index
    %c0_54 = arith.constant 0 : index
    %c0_55 = arith.constant 0 : index
    %191 = vector.load %arg2[%190, %c0_54, %c0_55] : memref<8x8x64xf32, #tpu.memory_space<vmem>>, vector<1x8x64xf32>
    %192 = vector.shape_cast %191 : vector<1x8x64xf32> to vector<8x64xf32>
    %193 = arith.subf %189, %192 : vector<8x64xf32>
    %194 = arith.maximumf %168, %193 : vector<8x64xf32>
    %c7_i32 = arith.constant 7 : i32
    %195 = arith.index_cast %c7_i32 : i32 to index
    %c0_56 = arith.constant 0 : index
    %c0_57 = arith.constant 0 : index
    %196 = vector.load %arg7[%195, %c0_56, %c0_57] : memref<8x8x256xf32, #tpu.memory_space<vmem>>, vector<1x8x256xf32>
    %197 = vector.shape_cast %196 : vector<1x8x256xf32> to vector<8x256xf32>
    %cst_58 = arith.constant dense<0.000000e+00> : vector<8x256xf32>
    %198 = tpu.matmul %189, %9, %cst_58 {dimension_numbers = #tpu.dot_dimension_numbers<[1], [0], [0], [1], [0, 0, 1, 1], [], []>} : vector<8x64xf32>, vector<64x256xf32>, vector<8x256xf32> -> vector<8x256xf32>
    %199 = arith.addf %197, %198 : vector<8x256xf32>
    %200 = vector.extract_strided_slice %199 {offsets = [0, 0], sizes = [8, 192], strides = [1, 1]} : vector<8x256xf32> to vector<8x192xf32>
    %201 = arith.negf %200 : vector<8x192xf32>
    %202 = math.exp %201 : vector<8x192xf32>
    %cst_59 = arith.constant 1.000000e+00 : f32
    %203 = vector.broadcast %cst_59 : f32 to vector<8x192xf32>
    %204 = arith.addf %203, %202 : vector<8x192xf32>
    %205 = arith.divf %203, %204 : vector<8x192xf32>
    %206 = vector.extract_strided_slice %199 {offsets = [0, 192], sizes = [8, 64], strides = [1, 1]} : vector<8x256xf32> to vector<8x64xf32>
    %207 = math.tanh %206 : vector<8x64xf32>
    %208 = vector.extract_strided_slice %205 {offsets = [0, 0], sizes = [8, 64], strides = [1, 1]} : vector<8x192xf32> to vector<8x64xf32>
    %209 = vector.extract_strided_slice %205 {offsets = [0, 64], sizes = [8, 64], strides = [1, 1]} : vector<8x192xf32> to vector<8x64xf32>
    %210 = vector.extract_strided_slice %205 {offsets = [0, 128], sizes = [8, 64], strides = [1, 1]} : vector<8x192xf32> to vector<8x64xf32>
    %211 = arith.mulf %209, %187 : vector<8x64xf32>
    %212 = arith.mulf %208, %207 : vector<8x64xf32>
    %213 = arith.addf %211, %212 : vector<8x64xf32>
    %214 = math.tanh %213 : vector<8x64xf32>
    %215 = arith.mulf %210, %214 : vector<8x64xf32>
    %216 = arith.index_cast %c7_i32 : i32 to index
    %c0_60 = arith.constant 0 : index
    %c0_61 = arith.constant 0 : index
    %217 = vector.load %arg2[%216, %c0_60, %c0_61] : memref<8x8x64xf32, #tpu.memory_space<vmem>>, vector<1x8x64xf32>
    %218 = vector.shape_cast %217 : vector<1x8x64xf32> to vector<8x64xf32>
    %219 = arith.subf %215, %218 : vector<8x64xf32>
    %220 = arith.maximumf %194, %219 : vector<8x64xf32>
    %c8_i32 = arith.constant 8 : i32
    %c0_62 = arith.constant 0 : index
    %c0_63 = arith.constant 0 : index
    %221 = vector.load %arg6[%c0_62, %c0_63] : memref<8x64xf32, #tpu.memory_space<vmem>>, vector<8x64xf32>
    tpu.vector_store %arg6[%c0_62, %c0_63], %220 {strides = array<i32>} : memref<8x64xf32, #tpu.memory_space<vmem>>, vector<8x64xf32>,
    return
  }
  func.func @transform_0(%arg0: i32) -> (i32, i32, i32) {
    %c0_i32 = arith.constant 0 : i32
    %c0_i32_0 = arith.constant 0 : i32
    %c0_i32_1 = arith.constant 0 : i32
    return %c0_i32, %arg0, %c0_i32_0 : i32, i32, i32
  }
  func.func @transform_1(%arg0: i32) -> (i32, i32, i32) {
    %c0_i32 = arith.constant 0 : i32
    %c0_i32_0 = arith.constant 0 : i32
    %c0_i32_1 = arith.constant 0 : i32
    return %c0_i32, %arg0, %c0_i32_0 : i32, i32, i32
  }
  func.func @transform_2(%arg0: i32) -> (i32, i32) {
    %c0_i32 = arith.constant 0 : i32
    %c0_i32_0 = arith.constant 0 : i32
    %c0_i32_1 = arith.constant 0 : i32
    return %c0_i32, %c0_i32_0 : i32, i32
  }
  func.func @transform_3(%arg0: i32) -> (i32, i32) {
    %c0_i32 = arith.constant 0 : i32
    %c0_i32_0 = arith.constant 0 : i32
    %c0_i32_1 = arith.constant 0 : i32
    return %c0_i32, %c0_i32_0 : i32, i32
  }
  func.func @transform_4(%arg0: i32) -> (i32, i32) {
    %c0_i32 = arith.constant 0 : i32
    %c0_i32_0 = arith.constant 0 : i32
    %c0_i32_1 = arith.constant 0 : i32
    return %c0_i32, %c0_i32_0 : i32, i32
  }
  func.func @transform_5(%arg0: i32) -> (i32, i32) {
    %c0_i32 = arith.constant 0 : i32
    %c0_i32_0 = arith.constant 0 : i32
    return %arg0, %c0_i32 : i32, i32
  }
}

</mosaic_0001>

<llo_original>
// kernel: tpu_custom_call.1
$region0: #{tpu_custom_call.1}
  #allocation0 [shape = 'u32[]', space=smem, size = 0x4, offset = 0x4, fixed_abs, tag = 'smem constant byte address 0x4 - core index']
  #allocation1 [shape = 'u32[144,128]{1,0:T(1,128)}', space=vmem, size = 0x12000, scoped, tag = 'internal scratch']
  #allocation2 [shape = 'f32[8,8,256]{2,1,0:T(8,128)}', space=vmem, size = 0x10000, scoped, tag = 'scratch operand']
  %s0 = inlined_call_operand.hbm [shape: f32[8,8,64], index: 0, kind: input, shape index: {}]
  %s1 = inlined_call_operand.hbm [shape: f32[8,8,64], index: 1, kind: input, shape index: {}]
  %s2 = inlined_call_operand.hbm [shape: f32[64,256], index: 2, kind: input, shape index: {}]
  %s3 = inlined_call_operand.hbm [shape: f32[64,256], index: 3, kind: input, shape index: {}]
  %s4 = inlined_call_operand.vmem [shape: f32[1,256], index: 4, kind: input, shape index: {}]
  %s5 = inlined_call_operand.hbm [shape: f32[8,64], index: 5, kind: output, shape index: {}]
  %s6 = sld [smem:[#allocation0]]
  $region46: #{tpu_custom_call.1} parent=0
    _
  %s8 = ssub.s32 1, %s6
  %s9 = scalar_select 0, %s8, %s6
  $region1: #{tpu_custom_call.1} parent=0
    #allocation3 [shape = 'u8[32768]{0}', space=vmem, size = 0x8000, scoped, tag = 'input window, operand 0, single buffered']
    #allocation4 [shape = 's32[1]{0}', space=sflag, size = 0x4, scoped, tag = 'scoped memory for tpu_custom_call.1']
    #allocation5 [shape = 's32[1]{0}', space=sflag, size = 0x4, scoped, tag = 'scoped memory for tpu_custom_call.1']
    #allocation6 [shape = 'u8[32768]{0}', space=vmem, size = 0x8000, scoped, tag = 'input window, operand 1, single buffered']
    #allocation7 [shape = 's32[1]{0}', space=sflag, size = 0x4, scoped, tag = 'scoped memory for tpu_custom_call.1']
    #allocation8 [shape = 'u8[65536]{0}', space=vmem, size = 0x10000, scoped, tag = 'input window, operand 2, single buffered']
    #allocation9 [shape = 'u8[65536]{0}', space=vmem, size = 0x10000, scoped, tag = 'input window, operand 3, single buffered']
    #allocation10 [shape = 's32[1]{0}', space=sflag, size = 0x4, scoped, tag = 'scoped memory for tpu_custom_call.1']
    #allocation11 [shape = 'u8[4096]{0}', space=vmem, size = 0x1000, scoped, tag = 'output window, operand 0, single buffered']
    %10 = vsyncpa [#allocation4], 0
    %11 = vsyncpa [#allocation7], 0
    %12 = vsyncpa [#allocation10], 0
    %13 = vsyncpa [#allocation5], 0
    // Predicated region
    $region2: #{tpu_custom_call.1} parent=1 // pred_check
      _
    $region3: #{tpu_custom_call.1} parent=1 // pred_check_branch
      %15 = sbr.rel (0) target = $region5
    $region4: #{tpu_custom_call.1} parent=1 // pred_region
      %s17 = ssub.s32 1024, 1024
      %18 = vsyncadd [#allocation4], %s17
      %s19 = sshll.u32 [#allocation3], 4
      %s20 = int_to_ptr.vmem [resolvable:$true] %s19
      %25 = dma.hbm_to_vmem [thread:$0]  %s0, 1024, %s20, [#allocation4], 128, 128, 8
    $region5: #{tpu_custom_call.1} parent=1 // pred_fallthru
      _
    // Predicated region
    $region6: #{tpu_custom_call.1} parent=1 // pred_check
      _
    $region7: #{tpu_custom_call.1} parent=1 // pred_check_branch
      %27 = sbr.rel (0) target = $region9
    $region8: #{tpu_custom_call.1} parent=1 // pred_region
      %s29 = ssub.s32 1024, 1024
      %30 = vsyncadd [#allocation7], %s29
      %s31 = sshll.u32 [#allocation6], 4
      %s32 = int_to_ptr.vmem [resolvable:$true] %s31
      %37 = dma.hbm_to_vmem [thread:$0]  %s1, 1024, %s32, [#allocation7], 128, 128, 8
    $region9: #{tpu_custom_call.1} parent=1 // pred_fallthru
      _
    // Predicated region
    $region10: #{tpu_custom_call.1} parent=1 // pred_check
      _
    $region11: #{tpu_custom_call.1} parent=1 // pred_check_branch
      %39 = sbr.rel (0) target = $region13
    $region12: #{tpu_custom_call.1} parent=1 // pred_region
      %s41 = ssub.s32 2048, 2048
      %42 = vsyncadd [#allocation7], %s41
      %s43 = sshll.u32 [#allocation8], 4
      %s44 = int_to_ptr.vmem [resolvable:$true] %s43
      %49 = dma.hbm_to_vmem [thread:$0]  %s2, 2048, %s44, [#allocation7], 256, 256, 16
    $region13: #{tpu_custom_call.1} parent=1 // pred_fallthru
      _
    // Predicated region
    $region14: #{tpu_custom_call.1} parent=1 // pred_check
      _
    $region15: #{tpu_custom_call.1} parent=1 // pred_check_branch
      %51 = sbr.rel (0) target = $region17
    $region16: #{tpu_custom_call.1} parent=1 // pred_region
      %s53 = ssub.s32 2048, 2048
      %54 = vsyncadd [#allocation10], %s53
      %s55 = sshll.u32 [#allocation9], 4
      %s56 = int_to_ptr.vmem [resolvable:$true] %s55
      %61 = dma.hbm_to_vmem [thread:$0]  %s3, 2048, %s56, [#allocation10], 256, 256, 16
    $region17: #{tpu_custom_call.1} parent=1 // pred_fallthru
      _
    // Predicated region
    $region18: #{tpu_custom_call.1} parent=1 // pred_check
      _
    $region19: #{tpu_custom_call.1} parent=1 // pred_check_branch
      %63 = sbr.rel (0) target = $region21
    $region20: #{tpu_custom_call.1} parent=1 // pred_region
      _
    $region21: #{tpu_custom_call.1} parent=1 // pred_fallthru
      _
    // Predicated region
    $region22: #{tpu_custom_call.1} parent=1 // pred_check
      _
    $region23: #{tpu_custom_call.1} parent=1 // pred_check_branch
      %65 = sbr.rel (0) target = $region25
    $region24: #{tpu_custom_call.1} parent=1 // pred_region
      %66 = dma.done [#allocation4], 1024
    $region25: #{tpu_custom_call.1} parent=1 // pred_fallthru
      _
    // Predicated region
    $region26: #{tpu_custom_call.1} parent=1 // pred_check
      _
    $region27: #{tpu_custom_call.1} parent=1 // pred_check_branch
      %68 = sbr.rel (0) target = $region29
    $region28: #{tpu_custom_call.1} parent=1 // pred_region
      %69 = dma.done [#allocation7], 1024
    $region29: #{tpu_custom_call.1} parent=1 // pred_fallthru
      _
    // Predicated region
    $region30: #{tpu_custom_call.1} parent=1 // pred_check
      _
    $region31: #{tpu_custom_call.1} parent=1 // pred_check_branch
      %71 = sbr.rel (0) target = $region33
    $region32: #{tpu_custom_call.1} parent=1 // pred_region
      %72 = dma.done [#allocation7], 2048
    $region33: #{tpu_custom_call.1} parent=1 // pred_fallthru
      _
    // Predicated region
    $region34: #{tpu_custom_call.1} parent=1 // pred_check
      _
    $region35: #{tpu_custom_call.1} parent=1 // pred_check_branch
      %74 = sbr.rel (0) target = $region37
    $region36: #{tpu_custom_call.1} parent=1 // pred_region
      %75 = dma.done [#allocation10], 2048
    $region37: #{tpu_custom_call.1} parent=1 // pred_fallthru
      _
    %v76 = vld [vmem:[#allocation3] sm:$0xff]
    %v77 = vld [vmem:[#allocation3 + $0x8] sm:$0xff]
    %v78 = vld [vmem:[#allocation3 + $0x10] sm:$0xff]
    %v79 = vld [vmem:[#allocation3 + $0x18] sm:$0xff]
    %v80 = vld [vmem:[#allocation3 + $0x20] sm:$0xff]
    %v81 = vld [vmem:[#allocation3 + $0x28] sm:$0xff]
    %v82 = vld [vmem:[#allocation3 + $0x30] sm:$0xff]
    %v83 = vld [vmem:[#allocation3 + $0x38] sm:$0xff]
    %v84 = vld [vmem:[#allocation8] sm:$0xff]
    %v85 = vld [vmem:[#allocation8 + $0x8] sm:$0xff]
    %v86 = vld [vmem:[#allocation8 + $0x10] sm:$0xff]
    %v87 = vld [vmem:[#allocation8 + $0x18] sm:$0xff]
    %v88 = vld [vmem:[#allocation8 + $0x20] sm:$0xff]
    %v89 = vld [vmem:[#allocation8 + $0x28] sm:$0xff]
    %v90 = vld [vmem:[#allocation8 + $0x30] sm:$0xff]
    %v91 = vld [vmem:[#allocation8 + $0x38] sm:$0xff]
    %v92 = vld [vmem:[#allocation8 + $0x40] sm:$0xff]
    %v93 = vld [vmem:[#allocation8 + $0x48] sm:$0xff]
    %v94 = vld [vmem:[#allocation8 + $0x50] sm:$0xff]
    %v95 = vld [vmem:[#allocation8 + $0x58] sm:$0xff]
    %v96 = vld [vmem:[#allocation8 + $0x60] sm:$0xff]
    %v97 = vld [vmem:[#allocation8 + $0x68] sm:$0xff]
    %v98 = vld [vmem:[#allocation8 + $0x70] sm:$0xff]
    %v99 = vld [vmem:[#allocation8 + $0x78] sm:$0xff]
    %v100 = vld [vmem:[%s4] sm:$0x3]
    %v102 = vlaneseq
    %v103 = vshrl.u32 %v102, 7
    %v104 = vsub.s32 0, %v103
    %v105 = vrot.slane %v100, %v104
    %v106 = vlaneseq
    %v107 = vshrl.u32 %v106, 7
    %v108 = vsub.s32 1, %v107
    %v109 = vrot.slane %v100, %v108
    %vm112 = vcmask 523264
    %v114 = vsel %vm112, %v76, 0
    %v117 = vsel %vm112, %v77, 0
    %v120 = vsel %vm112, %v78, 0
    %v123 = vsel %vm112, %v79, 0
    %v126 = vsel %vm112, %v80, 0
    %v129 = vsel %vm112, %v81, 0
    %v132 = vsel %vm112, %v82, 0
    %v135 = vsel %vm112, %v83, 0
    %137 = vmatprep.subr.mxu0 %v85
    %138 = vmatpush1.msra.mxu0 %v84
    %139 = vmatprep.subr.mxu0 %v87
    %140 = vmatpush1.msra.mxu0 %v86
    %141 = vmatprep.subr.mxu0 %v89
    %142 = vmatpush1.msra.mxu0 %v88
    %143 = vmatprep.subr.mxu0 %v91
    %144 = vmatpush1.msra.mxu0 %v90
    %145 = vmatprep.subr.mxu0 %v93
    %146 = vmatpush1.msra.mxu0 %v92
    %147 = vmatprep.subr.mxu0 %v95
    %148 = vmatpush1.msra.mxu0 %v94
    %149 = vmatprep.subr.mxu0 %v97
    %150 = vmatpush1.msra.mxu0 %v96
    %151 = vmatprep.subr.mxu0 %v99
    %152 = vmatpush1.msra.mxu0 %v98
    %153 = vmatprep.subr.mxu0 0.0
    %154 = vmatpush1.msra.mxu0 0.0
    %155 = vmatprep.subr.mxu0 0.0
    %156 = vmatpush1.msra.mxu0 0.0
    %157 = vmatprep.subr.mxu0 0.0
    %158 = vmatpush1.msra.mxu0 0.0
    %159 = vmatprep.subr.mxu0 0.0
    %160 = vmatpush1.msra.mxu0 0.0
    %161 = vmatprep.subr.mxu0 0.0
    %162 = vmatpush1.msra.mxu0 0.0
    %163 = vmatprep.subr.mxu0 0.0
    %164 = vmatpush1.msra.mxu0 0.0
    %165 = vmatprep.subr.mxu0 0.0
    %166 = vmatpush1.msra.mxu0 0.0
    %167 = vmatprep.subr.mxu0 0.0
    %168 = vmatpush1.msra.mxu0 0.0
    %169 = vmatprep.subr.mxu0 0.0
    %170 = vmatpush1.msra.mxu0 0.0
    %171 = vmatprep.subr.mxu0 0.0
    %172 = vmatpush1.msra.mxu0 0.0
    %173 = vmatprep.subr.mxu0 0.0
    %174 = vmatpush1.msra.mxu0 0.0
    %175 = vmatprep.subr.mxu0 0.0
    %176 = vmatpush1.msra.mxu0 0.0
    %177 = vmatprep.subr.mxu0 0.0
    %178 = vmatpush1.msra.mxu0 0.0
    %179 = vmatprep.subr.mxu0 0.0
    %180 = vmatpush1.msra.mxu0 0.0
    %181 = vmatprep.subr.mxu0 0.0
    %182 = vmatpush1.msra.mxu0 0.0
    %183 = vmatprep.subr.mxu0 0.0
    %184 = vmatpush1.msra.mxu0 0.0
    %185 = vmatprep.subr.mxu0 0.0
    %186 = vmatpush1.msra.mxu0 0.0
    %187 = vmatprep.subr.mxu0 0.0
    %188 = vmatpush1.msra.mxu0 0.0
    %189 = vmatprep.subr.mxu0 0.0
    %190 = vmatpush1.msra.mxu0 0.0
    %191 = vmatprep.subr.mxu0 0.0
    %192 = vmatpush1.msra.mxu0 0.0
    %193 = vmatprep.subr.mxu0 0.0
    %194 = vmatpush1.msra.mxu0 0.0
    %195 = vmatprep.subr.mxu0 0.0
    %196 = vmatpush1.msra.mxu0 0.0
    %197 = vmatprep.subr.mxu0 0.0
    %198 = vmatpush1.msra.mxu0 0.0
    %199 = vmatprep.subr.mxu0 0.0
    %200 = vmatpush1.msra.mxu0 0.0
    %201 = vmatprep.mubr.f32.mxu0 0.0
    %202 = vmatmul.mubr.f32.gmra.mrb[0].mxu0 %v114
    %v203 = vpop.f32.mrb[0].mxu0
    %v204 = vadd.f32 %v105, %v203
    %v205 = vpop.f32.mrb[0].mxu0
    %v206 = vadd.f32 %v109, %v205
    %207 = vmatprep.mubr.f32.mxu0 0.0
    %208 = vmatmul.mubr.f32.gmra.mrb[0].mxu0 %v117
    %v209 = vpop.f32.mrb[0].mxu0
    %v210 = vadd.f32 %v105, %v209
    %v211 = vpop.f32.mrb[0].mxu0
    %v212 = vadd.f32 %v109, %v211
    %213 = vmatprep.mubr.f32.mxu0 0.0
    %214 = vmatmul.mubr.f32.gmra.mrb[0].mxu0 %v120
    %v215 = vpop.f32.mrb[0].mxu0
    %v216 = vadd.f32 %v105, %v215
    %v217 = vpop.f32.mrb[0].mxu0
    %v218 = vadd.f32 %v109, %v217
    %219 = vmatprep.mubr.f32.mxu0 0.0
    %220 = vmatmul.mubr.f32.gmra.mrb[0].mxu0 %v123
    %v221 = vpop.f32.mrb[0].mxu0
    %v222 = vadd.f32 %v105, %v221
    %v223 = vpop.f32.mrb[0].mxu0
    %v224 = vadd.f32 %v109, %v223
    %225 = vmatprep.mubr.f32.mxu0 0.0
    %226 = vmatmul.mubr.f32.gmra.mrb[0].mxu0 %v126
    %v227 = vpop.f32.mrb[0].mxu0
    %v228 = vadd.f32 %v105, %v227
    %v229 = vpop.f32.mrb[0].mxu0
    %v230 = vadd.f32 %v109, %v229
    %231 = vmatprep.mubr.f32.mxu0 0.0
    %232 = vmatmul.mubr.f32.gmra.mrb[0].mxu0 %v129
    %v233 = vpop.f32.mrb[0].mxu0
    %v234 = vadd.f32 %v105, %v233
    %v235 = vpop.f32.mrb[0].mxu0
    %v236 = vadd.f32 %v109, %v235
    %237 = vmatprep.mubr.f32.mxu0 0.0
    %238 = vmatmul.mubr.f32.gmra.mrb[0].mxu0 %v132
    %v239 = vpop.f32.mrb[0].mxu0
    %v240 = vadd.f32 %v105, %v239
    %v241 = vpop.f32.mrb[0].mxu0
    %v242 = vadd.f32 %v109, %v241
    %243 = vmatprep.mubr.f32.mxu0 0.0
    %244 = vmatmul.mubr.f32.gmra.mrb[0].mxu0 %v135
    %v245 = vpop.f32.mrb[0].mxu0
    %v246 = vadd.f32 %v105, %v245
    %v247 = vpop.f32.mrb[0].mxu0
    %v248 = vadd.f32 %v109, %v247
    %249 = vdwg.mxu0
    %250 = vst [vmem:[#allocation2] sm:$0xff] %v204
    %251 = vst [vmem:[#allocation2 + $0x8] sm:$0xff] %v206
    %252 = vst [vmem:[#allocation2 + $0x10] sm:$0xff] %v210
    %253 = vst [vmem:[#allocation2 + $0x18] sm:$0xff] %v212
    %254 = vst [vmem:[#allocation2 + $0x20] sm:$0xff] %v216
    %255 = vst [vmem:[#allocation2 + $0x28] sm:$0xff] %v218
    %256 = vst [vmem:[#allocation2 + $0x30] sm:$0xff] %v222
    %257 = vst [vmem:[#allocation2 + $0x38] sm:$0xff] %v224
    %258 = vst [vmem:[#allocation2 + $0x40] sm:$0xff] %v228
    %259 = vst [vmem:[#allocation2 + $0x48] sm:$0xff] %v230
    %260 = vst [vmem:[#allocation2 + $0x50] sm:$0xff] %v234
    %261 = vst [vmem:[#allocation2 + $0x58] sm:$0xff] %v236
    %262 = vst [vmem:[#allocation2 + $0x60] sm:$0xff] %v240
    %263 = vst [vmem:[#allocation2 + $0x68] sm:$0xff] %v242
    %264 = vst [vmem:[#allocation2 + $0x70] sm:$0xff] %v246
    %265 = vst [vmem:[#allocation2 + $0x78] sm:$0xff] %v248
    %v266 = vld [vmem:[#allocation9] sm:$0xff]
    %v267 = vld [vmem:[#allocation9 + $0x8] sm:$0xff]
    %v268 = vld [vmem:[#allocation9 + $0x10] sm:$0xff]
    %v269 = vld [vmem:[#allocation9 + $0x18] sm:$0xff]
    %v270 = vld [vmem:[#allocation9 + $0x20] sm:$0xff]
    %v271 = vld [vmem:[#allocation9 + $0x28] sm:$0xff]
    %v272 = vld [vmem:[#allocation9 + $0x30] sm:$0xff]
    %v273 = vld [vmem:[#allocation9 + $0x38] sm:$0xff]
    %v274 = vld [vmem:[#allocation9 + $0x40] sm:$0xff]
    %v275 = vld [vmem:[#allocation9 + $0x48] sm:$0xff]
    %v276 = vld [vmem:[#allocation9 + $0x50] sm:$0xff]
    %v277 = vld [vmem:[#allocation9 + $0x58] sm:$0xff]
    %v278 = vld [vmem:[#allocation9 + $0x60] sm:$0xff]
    %v279 = vld [vmem:[#allocation9 + $0x68] sm:$0xff]
    %v280 = vld [vmem:[#allocation9 + $0x70] sm:$0xff]
    %v281 = vld [vmem:[#allocation9 + $0x78] sm:$0xff]
    %v282 = vld [vmem:[#allocation2] sm:$0xff]
    %v283 = vld [vmem:[#allocation2 + $0x8] sm:$0xff]
    %v285 = vsel %vm112, 0.0, 0
    %287 = vmatprep.subr.mxu0 %v267
    %288 = vmatpush1.msra.mxu0 %v266
    %289 = vmatprep.subr.mxu0 %v269
    %290 = vmatpush1.msra.mxu0 %v268
    %291 = vmatprep.subr.mxu0 %v271
    %292 = vmatpush1.msra.mxu0 %v270
    %293 = vmatprep.subr.mxu0 %v273
    %294 = vmatpush1.msra.mxu0 %v272
    %295 = vmatprep.subr.mxu0 %v275
    %296 = vmatpush1.msra.mxu0 %v274
    %297 = vmatprep.subr.mxu0 %v277
    %298 = vmatpush1.msra.mxu0 %v276
    %299 = vmatprep.subr.mxu0 %v279
    %300 = vmatpush1.msra.mxu0 %v278
    %301 = vmatprep.subr.mxu0 %v281
    %302 = vmatpush1.msra.mxu0 %v280
    %303 = vmatprep.subr.mxu0 0.0
    %304 = vmatpush1.msra.mxu0 0.0
    %305 = vmatprep.subr.mxu0 0.0
    %306 = vmatpush1.msra.mxu0 0.0
    %307 = vmatprep.subr.mxu0 0.0
    %308 = vmatpush1.msra.mxu0 0.0
    %309 = vmatprep.subr.mxu0 0.0
    %310 = vmatpush1.msra.mxu0 0.0
    %311 = vmatprep.subr.mxu0 0.0
    %312 = vmatpush1.msra.mxu0 0.0
    %313 = vmatprep.subr.mxu0 0.0
    %314 = vmatpush1.msra.mxu0 0.0
    %315 = vmatprep.subr.mxu0 0.0
    %316 = vmatpush1.msra.mxu0 0.0
    %317 = vmatprep.subr.mxu0 0.0
    %318 = vmatpush1.msra.mxu0 0.0
    %319 = vmatprep.subr.mxu0 0.0
    %320 = vmatpush1.msra.mxu0 0.0
    %321 = vmatprep.subr.mxu0 0.0
    %322 = vmatpush1.msra.mxu0 0.0
    %323 = vmatprep.subr.mxu0 0.0
    %324 = vmatpush1.msra.mxu0 0.0
    %325 = vmatprep.subr.mxu0 0.0
    %326 = vmatpush1.msra.mxu0 0.0
    %327 = vmatprep.subr.mxu0 0.0
    %328 = vmatpush1.msra.mxu0 0.0
    %329 = vmatprep.subr.mxu0 0.0
    %330 = vmatpush1.msra.mxu0 0.0
    %331 = vmatprep.subr.mxu0 0.0
    %332 = vmatpush1.msra.mxu0 0.0
    %333 = vmatprep.subr.mxu0 0.0
    %334 = vmatpush1.msra.mxu0 0.0
    %335 = vmatprep.subr.mxu0 0.0
    %336 = vmatpush1.msra.mxu0 0.0
    %337 = vmatprep.subr.mxu0 0.0
    %338 = vmatpush1.msra.mxu0 0.0
    %339 = vmatprep.subr.mxu0 0.0
    %340 = vmatpush1.msra.mxu0 0.0
    %341 = vmatprep.subr.mxu0 0.0
    %342 = vmatpush1.msra.mxu0 0.0
    %343 = vmatprep.subr.mxu0 0.0
    %344 = vmatpush1.msra.mxu0 0.0
    %345 = vmatprep.subr.mxu0 0.0
    %346 = vmatpush1.msra.mxu0 0.0
    %347 = vmatprep.subr.mxu0 0.0
    %348 = vmatpush1.msra.mxu0 0.0
    %349 = vmatprep.subr.mxu0 0.0
    %350 = vmatpush1.msra.mxu0 0.0
    %351 = vmatprep.mubr.f32.mxu0 0.0
    %352 = vmatmul.mubr.f32.gmra.mrb[0].mxu0 %v285
    %v353 = vpop.f32.mrb[0].mxu0
    %v354 = vadd.f32 0.0, %v353
    %v355 = vpop.f32.mrb[0].mxu0
    %v356 = vadd.f32 0.0, %v355
    %357 = vdwg.mxu0
    %v358 = vadd.f32 %v282, %v354
    %v359 = vadd.f32 %v283, %v356
    %v360 = vxor.u32 %v358, 2147483648
    %v361 = vxor.u32 %v359, 2147483648
    %v362 = vmul.f32 %v360, 1.442695
    %v363 = vpow.pop %v362
    %v364 = vmul.f32 %v361, 1.442695
    %v365 = vpow.pop %v364
    %v366 = vadd.f32 %v363, 1.0
    %v367 = vadd.f32 %v365, 1.0
    %v368 = vrcp.pop %v366
    %v369 = vmul.f32 1.0, %v368
    %v370 = vrcp.pop %v367
    %v371 = vmul.f32 1.0, %v370
    %v372 = vtanh.pop %v359
    %v373 = vmul.f32 %v369, 0.0
    %375 = vrot.lane.b32.xlu0 %v372, 64
    %v376 = vpop.permute.xlu0 %375
    %v378 = vmul.f32 %v369, %v376
    %380 = vrot.lane.b32.xlu0 %v378, 64
    %v381 = vpop.permute.xlu0 %380
    %v383 = vadd.f32 %v373, %v381
    %v384 = vtanh.pop %v383
    %386 = vrot.lane.b32.xlu0 %v384, 64
    %v387 = vpop.permute.xlu0 %386
    %v389 = vmul.f32 %v371, %v387
    %v390 = vld [vmem:[#allocation6] sm:$0xff]
    %v391 = vsub.f32 %v389, %v390
    %s392 = scalar_lea.vmem [#allocation2], 16
    %v393 = vld [vmem:[%s392] sm:$0xff]
    %v394 = vld [vmem:[%s392 + $0x8] sm:$0xff]
    %v396 = vsel %vm112, %v389, 0
    %398 = vmatprep.subr.mxu0 %v267
    %399 = vmatpush1.msra.mxu0 %v266
    %400 = vmatprep.subr.mxu0 %v269
    %401 = vmatpush1.msra.mxu0 %v268
    %402 = vmatprep.subr.mxu0 %v271
    %403 = vmatpush1.msra.mxu0 %v270
    %404 = vmatprep.subr.mxu0 %v273
    %405 = vmatpush1.msra.mxu0 %v272
    %406 = vmatprep.subr.mxu0 %v275
    %407 = vmatpush1.msra.mxu0 %v274
    %408 = vmatprep.subr.mxu0 %v277
    %409 = vmatpush1.msra.mxu0 %v276
    %410 = vmatprep.subr.mxu0 %v279
    %411 = vmatpush1.msra.mxu0 %v278
    %412 = vmatprep.subr.mxu0 %v281
    %413 = vmatpush1.msra.mxu0 %v280
    %414 = vmatprep.subr.mxu0 0.0
    %415 = vmatpush1.msra.mxu0 0.0
    %416 = vmatprep.subr.mxu0 0.0
    %417 = vmatpush1.msra.mxu0 0.0
    %418 = vmatprep.subr.mxu0 0.0
    %419 = vmatpush1.msra.mxu0 0.0
    %420 = vmatprep.subr.mxu0 0.0
    %421 = vmatpush1.msra.mxu0 0.0
    %422 = vmatprep.subr.mxu0 0.0
    %423 = vmatpush1.msra.mxu0 0.0
    %424 = vmatprep.subr.mxu0 0.0
    %425 = vmatpush1.msra.mxu0 0.0
    %426 = vmatprep.subr.mxu0 0.0
    %427 = vmatpush1.msra.mxu0 0.0
    %428 = vmatprep.subr.mxu0 0.0
    %429 = vmatpush1.msra.mxu0 0.0
    %430 = vmatprep.subr.mxu0 0.0
    %431 = vmatpush1.msra.mxu0 0.0
    %432 = vmatprep.subr.mxu0 0.0
    %433 = vmatpush1.msra.mxu0 0.0
    %434 = vmatprep.subr.mxu0 0.0
    %435 = vmatpush1.msra.mxu0 0.0
    %436 = vmatprep.subr.mxu0 0.0
    %437 = vmatpush1.msra.mxu0 0.0
    %438 = vmatprep.subr.mxu0 0.0
    %439 = vmatpush1.msra.mxu0 0.0
    %440 = vmatprep.subr.mxu0 0.0
    %441 = vmatpush1.msra.mxu0 0.0
    %442 = vmatprep.subr.mxu0 0.0
    %443 = vmatpush1.msra.mxu0 0.0
    %444 = vmatprep.subr.mxu0 0.0
    %445 = vmatpush1.msra.mxu0 0.0
    %446 = vmatprep.subr.mxu0 0.0
    %447 = vmatpush1.msra.mxu0 0.0
    %448 = vmatprep.subr.mxu0 0.0
    %449 = vmatpush1.msra.mxu0 0.0
    %450 = vmatprep.subr.mxu0 0.0
    %451 = vmatpush1.msra.mxu0 0.0
    %452 = vmatprep.subr.mxu0 0.0
    %453 = vmatpush1.msra.mxu0 0.0
    %454 = vmatprep.subr.mxu0 0.0
    %455 = vmatpush1.msra.mxu0 0.0
    %456 = vmatprep.subr.mxu0 0.0
    %457 = vmatpush1.msra.mxu0 0.0
    %458 = vmatprep.subr.mxu0 0.0
    %459 = vmatpush1.msra.mxu0 0.0
    %460 = vmatprep.subr.mxu0 0.0
    %461 = vmatpush1.msra.mxu0 0.0
    %462 = vmatprep.mubr.f32.mxu0 0.0
    %463 = vmatmul.mubr.f32.gmra.mrb[0].mxu0 %v396
    %v464 = vpop.f32.mrb[0].mxu0
    %v465 = vadd.f32 0.0, %v464
    %v466 = vpop.f32.mrb[0].mxu0
    %v467 = vadd.f32 0.0, %v466
    %468 = vdwg.mxu0
    %v469 = vadd.f32 %v393, %v465
    %v470 = vadd.f32 %v394, %v467
    %v471 = vxor.u32 %v469, 2147483648
    %v472 = vxor.u32 %v470, 2147483648
    %v473 = vmul.f32 %v471, 1.442695
    %v474 = vpow.pop %v473
    %v475 = vmul.f32 %v472, 1.442695
    %v476 = vpow.pop %v475
    %v477 = vadd.f32 %v474, 1.0
    %v478 = vadd.f32 %v476, 1.0
    %v479 = vrcp.pop %v477
    %v480 = vmul.f32 1.0, %v479
    %v481 = vrcp.pop %v478
    %v482 = vmul.f32 1.0, %v481
    %v483 = vtanh.pop %v470
    %v484 = vmul.f32 %v480, %v383
    %486 = vrot.lane.b32.xlu0 %v483, 64
    %v487 = vpop.permute.xlu0 %486
    %v489 = vmul.f32 %v480, %v487
    %491 = vrot.lane.b32.xlu0 %v489, 64
    %v492 = vpop.permute.xlu0 %491
    %v494 = vadd.f32 %v484, %v492
    %v495 = vtanh.pop %v494
    %497 = vrot.lane.b32.xlu0 %v495, 64
    %v498 = vpop.permute.xlu0 %497
    %v500 = vmul.f32 %v482, %v498
    %s501 = scalar_lea.vmem [#allocation6], 8
    %v502 = vld [vmem:[%s501] sm:$0xff]
    %v503 = vsub.f32 %v500, %v502
    %v504 = vmax.f32 %v391, %v503
    %s505 = scalar_lea.vmem [#allocation2], 32
    %v506 = vld [vmem:[%s505] sm:$0xff]
    %v507 = vld [vmem:[%s505 + $0x8] sm:$0xff]
    %v509 = vsel %vm112, %v500, 0
    %511 = vmatprep.subr.mxu0 %v267
    %512 = vmatpush1.msra.mxu0 %v266
    %513 = vmatprep.subr.mxu0 %v269
    %514 = vmatpush1.msra.mxu0 %v268
    %515 = vmatprep.subr.mxu0 %v271
    %516 = vmatpush1.msra.mxu0 %v270
    %517 = vmatprep.subr.mxu0 %v273
    %518 = vmatpush1.msra.mxu0 %v272
    %519 = vmatprep.subr.mxu0 %v275
    %520 = vmatpush1.msra.mxu0 %v274
    %521 = vmatprep.subr.mxu0 %v277
    %522 = vmatpush1.msra.mxu0 %v276
    %523 = vmatprep.subr.mxu0 %v279
    %524 = vmatpush1.msra.mxu0 %v278
    %525 = vmatprep.subr.mxu0 %v281
    %526 = vmatpush1.msra.mxu0 %v280
    %527 = vmatprep.subr.mxu0 0.0
    %528 = vmatpush1.msra.mxu0 0.0
    %529 = vmatprep.subr.mxu0 0.0
    %530 = vmatpush1.msra.mxu0 0.0
    %531 = vmatprep.subr.mxu0 0.0
    %532 = vmatpush1.msra.mxu0 0.0
    %533 = vmatprep.subr.mxu0 0.0
    %534 = vmatpush1.msra.mxu0 0.0
    %535 = vmatprep.subr.mxu0 0.0
    %536 = vmatpush1.msra.mxu0 0.0
    %537 = vmatprep.subr.mxu0 0.0
    %538 = vmatpush1.msra.mxu0 0.0
    %539 = vmatprep.subr.mxu0 0.0
    %540 = vmatpush1.msra.mxu0 0.0
    %541 = vmatprep.subr.mxu0 0.0
    %542 = vmatpush1.msra.mxu0 0.0
    %543 = vmatprep.subr.mxu0 0.0
    %544 = vmatpush1.msra.mxu0 0.0
    %545 = vmatprep.subr.mxu0 0.0
    %546 = vmatpush1.msra.mxu0 0.0
    %547 = vmatprep.subr.mxu0 0.0
    %548 = vmatpush1.msra.mxu0 0.0
    %549 = vmatprep.subr.mxu0 0.0
    %550 = vmatpush1.msra.mxu0 0.0
    %551 = vmatprep.subr.mxu0 0.0
    %552 = vmatpush1.msra.mxu0 0.0
    %553 = vmatprep.subr.mxu0 0.0
    %554 = vmatpush1.msra.mxu0 0.0
    %555 = vmatprep.subr.mxu0 0.0
    %556 = vmatpush1.msra.mxu0 0.0
    %557 = vmatprep.subr.mxu0 0.0
    %558 = vmatpush1.msra.mxu0 0.0
    %559 = vmatprep.subr.mxu0 0.0
    %560 = vmatpush1.msra.mxu0 0.0
    %561 = vmatprep.subr.mxu0 0.0
    %562 = vmatpush1.msra.mxu0 0.0
    %563 = vmatprep.subr.mxu0 0.0
    %564 = vmatpush1.msra.mxu0 0.0
    %565 = vmatprep.subr.mxu0 0.0
    %566 = vmatpush1.msra.mxu0 0.0
    %567 = vmatprep.subr.mxu0 0.0
    %568 = vmatpush1.msra.mxu0 0.0
    %569 = vmatprep.subr.mxu0 0.0
    %570 = vmatpush1.msra.mxu0 0.0
    %571 = vmatprep.subr.mxu0 0.0
    %572 = vmatpush1.msra.mxu0 0.0
    %573 = vmatprep.subr.mxu0 0.0
    %574 = vmatpush1.msra.mxu0 0.0
    %575 = vmatprep.mubr.f32.mxu0 0.0
    %576 = vmatmul.mubr.f32.gmra.mrb[0].mxu0 %v509
    %v577 = vpop.f32.mrb[0].mxu0
    %v578 = vadd.f32 0.0, %v577
    %v579 = vpop.f32.mrb[0].mxu0
    %v580 = vadd.f32 0.0, %v579
    %581 = vdwg.mxu0
    %v582 = vadd.f32 %v506, %v578
    %v583 = vadd.f32 %v507, %v580
    %v584 = vxor.u32 %v582, 2147483648
    %v585 = vxor.u32 %v583, 2147483648
    %v586 = vmul.f32 %v584, 1.442695
    %v587 = vpow.pop %v586
    %v588 = vmul.f32 %v585, 1.442695
    %v589 = vpow.pop %v588
    %v590 = vadd.f32 %v587, 1.0
    %v591 = vadd.f32 %v589, 1.0
    %v592 = vrcp.pop %v590
    %v593 = vmul.f32 1.0, %v592
    %v594 = vrcp.pop %v591
    %v595 = vmul.f32 1.0, %v594
    %v596 = vtanh.pop %v583
    %v597 = vmul.f32 %v593, %v494
    %599 = vrot.lane.b32.xlu0 %v596, 64
    %v600 = vpop.permute.xlu0 %599
    %v602 = vmul.f32 %v593, %v600
    %604 = vrot.lane.b32.xlu0 %v602, 64
    %v605 = vpop.permute.xlu0 %604
    %v607 = vadd.f32 %v597, %v605
    %v608 = vtanh.pop %v607
    %610 = vrot.lane.b32.xlu0 %v608, 64
    %v611 = vpop.permute.xlu0 %610
    %v613 = vmul.f32 %v595, %v611
    %s614 = scalar_lea.vmem [#allocation6], 16
    %v615 = vld [vmem:[%s614] sm:$0xff]
    %v616 = vsub.f32 %v613, %v615
    %v617 = vmax.f32 %v504, %v616
    %s618 = scalar_lea.vmem [#allocation2], 48
    %v619 = vld [vmem:[%s618] sm:$0xff]
    %v620 = vld [vmem:[%s618 + $0x8] sm:$0xff]
    %v622 = vsel %vm112, %v613, 0
    %624 = vmatprep.subr.mxu0 %v267
    %625 = vmatpush1.msra.mxu0 %v266
    %626 = vmatprep.subr.mxu0 %v269
    %627 = vmatpush1.msra.mxu0 %v268
    %628 = vmatprep.subr.mxu0 %v271
    %629 = vmatpush1.msra.mxu0 %v270
    %630 = vmatprep.subr.mxu0 %v273
    %631 = vmatpush1.msra.mxu0 %v272
    %632 = vmatprep.subr.mxu0 %v275
    %633 = vmatpush1.msra.mxu0 %v274
    %634 = vmatprep.subr.mxu0 %v277
    %635 = vmatpush1.msra.mxu0 %v276
    %636 = vmatprep.subr.mxu0 %v279
    %637 = vmatpush1.msra.mxu0 %v278
    %638 = vmatprep.subr.mxu0 %v281
    %639 = vmatpush1.msra.mxu0 %v280
    %640 = vmatprep.subr.mxu0 0.0
    %641 = vmatpush1.msra.mxu0 0.0
    %642 = vmatprep.subr.mxu0 0.0
    %643 = vmatpush1.msra.mxu0 0.0
    %644 = vmatprep.subr.mxu0 0.0
    %645 = vmatpush1.msra.mxu0 0.0
    %646 = vmatprep.subr.mxu0 0.0
    %647 = vmatpush1.msra.mxu0 0.0
    %648 = vmatprep.subr.mxu0 0.0
    %649 = vmatpush1.msra.mxu0 0.0
    %650 = vmatprep.subr.mxu0 0.0
    %651 = vmatpush1.msra.mxu0 0.0
    %652 = vmatprep.subr.mxu0 0.0
    %653 = vmatpush1.msra.mxu0 0.0
    %654 = vmatprep.subr.mxu0 0.0
    %655 = vmatpush1.msra.mxu0 0.0
    %656 = vmatprep.subr.mxu0 0.0
    %657 = vmatpush1.msra.mxu0 0.0
    %658 = vmatprep.subr.mxu0 0.0
    %659 = vmatpush1.msra.mxu0 0.0
    %660 = vmatprep.subr.mxu0 0.0
    %661 = vmatpush1.msra.mxu0 0.0
    %662 = vmatprep.subr.mxu0 0.0
    %663 = vmatpush1.msra.mxu0 0.0
    %664 = vmatprep.subr.mxu0 0.0
    %665 = vmatpush1.msra.mxu0 0.0
    %666 = vmatprep.subr.mxu0 0.0
    %667 = vmatpush1.msra.mxu0 0.0
    %668 = vmatprep.subr.mxu0 0.0
    %669 = vmatpush1.msra.mxu0 0.0
    %670 = vmatprep.subr.mxu0 0.0
    %671 = vmatpush1.msra.mxu0 0.0
    %672 = vmatprep.subr.mxu0 0.0
    %673 = vmatpush1.msra.mxu0 0.0
    %674 = vmatprep.subr.mxu0 0.0
    %675 = vmatpush1.msra.mxu0 0.0
    %676 = vmatprep.subr.mxu0 0.0
    %677 = vmatpush1.msra.mxu0 0.0
    %678 = vmatprep.subr.mxu0 0.0
    %679 = vmatpush1.msra.mxu0 0.0
    %680 = vmatprep.subr.mxu0 0.0
    %681 = vmatpush1.msra.mxu0 0.0
    %682 = vmatprep.subr.mxu0 0.0
    %683 = vmatpush1.msra.mxu0 0.0
    %684 = vmatprep.subr.mxu0 0.0
    %685 = vmatpush1.msra.mxu0 0.0
    %686 = vmatprep.subr.mxu0 0.0
    %687 = vmatpush1.msra.mxu0 0.0
    %688 = vmatprep.mubr.f32.mxu0 0.0
    %689 = vmatmul.mubr.f32.gmra.mrb[0].mxu0 %v622
    %v690 = vpop.f32.mrb[0].mxu0
    %v691 = vadd.f32 0.0, %v690
    %v692 = vpop.f32.mrb[0].mxu0
    %v693 = vadd.f32 0.0, %v692
    %694 = vdwg.mxu0
    %v695 = vadd.f32 %v619, %v691
    %v696 = vadd.f32 %v620, %v693
    %v697 = vxor.u32 %v695, 2147483648
    %v698 = vxor.u32 %v696, 2147483648
    %v699 = vmul.f32 %v697, 1.442695
    %v700 = vpow.pop %v699
    %v701 = vmul.f32 %v698, 1.442695
    %v702 = vpow.pop %v701
    %v703 = vadd.f32 %v700, 1.0
    %v704 = vadd.f32 %v702, 1.0
    %v705 = vrcp.pop %v703
    %v706 = vmul.f32 1.0, %v705
    %v707 = vrcp.pop %v704
    %v708 = vmul.f32 1.0, %v707
    %v709 = vtanh.pop %v696
    %v710 = vmul.f32 %v706, %v607
    %712 = vrot.lane.b32.xlu0 %v709, 64
    %v713 = vpop.permute.xlu0 %712
    %v715 = vmul.f32 %v706, %v713
    %717 = vrot.lane.b32.xlu0 %v715, 64
    %v718 = vpop.permute.xlu0 %717
    %v720 = vadd.f32 %v710, %v718
    %v721 = vtanh.pop %v720
    %723 = vrot.lane.b32.xlu0 %v721, 64
    %v724 = vpop.permute.xlu0 %723
    %v726 = vmul.f32 %v708, %v724
    %s727 = scalar_lea.vmem [#allocation6], 24
    %v728 = vld [vmem:[%s727] sm:$0xff]
    %v729 = vsub.f32 %v726, %v728
    %v730 = vmax.f32 %v617, %v729
    %s731 = scalar_lea.vmem [#allocation2], 64
    %v732 = vld [vmem:[%s731] sm:$0xff]
    %v733 = vld [vmem:[%s731 + $0x8] sm:$0xff]
    %v735 = vsel %vm112, %v726, 0
    %737 = vmatprep.subr.mxu0 %v267
    %738 = vmatpush1.msra.mxu0 %v266
    %739 = vmatprep.subr.mxu0 %v269
    %740 = vmatpush1.msra.mxu0 %v268
    %741 = vmatprep.subr.mxu0 %v271
    %742 = vmatpush1.msra.mxu0 %v270
    %743 = vmatprep.subr.mxu0 %v273
    %744 = vmatpush1.msra.mxu0 %v272
    %745 = vmatprep.subr.mxu0 %v275
    %746 = vmatpush1.msra.mxu0 %v274
    %747 = vmatprep.subr.mxu0 %v277
    %748 = vmatpush1.msra.mxu0 %v276
    %749 = vmatprep.subr.mxu0 %v279
    %750 = vmatpush1.msra.mxu0 %v278
    %751 = vmatprep.subr.mxu0 %v281
    %752 = vmatpush1.msra.mxu0 %v280
    %753 = vmatprep.subr.mxu0 0.0
    %754 = vmatpush1.msra.mxu0 0.0
    %755 = vmatprep.subr.mxu0 0.0
    %756 = vmatpush1.msra.mxu0 0.0
    %757 = vmatprep.subr.mxu0 0.0
    %758 = vmatpush1.msra.mxu0 0.0
    %759 = vmatprep.subr.mxu0 0.0
    %760 = vmatpush1.msra.mxu0 0.0
    %761 = vmatprep.subr.mxu0 0.0
    %762 = vmatpush1.msra.mxu0 0.0
    %763 = vmatprep.subr.mxu0 0.0
    %764 = vmatpush1.msra.mxu0 0.0
    %765 = vmatprep.subr.mxu0 0.0
    %766 = vmatpush1.msra.mxu0 0.0
    %767 = vmatprep.subr.mxu0 0.0
    %768 = vmatpush1.msra.mxu0 0.0
    %769 = vmatprep.subr.mxu0 0.0
    %770 = vmatpush1.msra.mxu0 0.0
    %771 = vmatprep.subr.mxu0 0.0
    %772 = vmatpush1.msra.mxu0 0.0
    %773 = vmatprep.subr.mxu0 0.0
    %774 = vmatpush1.msra.mxu0 0.0
    %775 = vmatprep.subr.mxu0 0.0
    %776 = vmatpush1.msra.mxu0 0.0
    %777 = vmatprep.subr.mxu0 0.0
    %778 = vmatpush1.msra.mxu0 0.0
    %779 = vmatprep.subr.mxu0 0.0
    %780 = vmatpush1.msra.mxu0 0.0
    %781 = vmatprep.subr.mxu0 0.0
    %782 = vmatpush1.msra.mxu0 0.0
    %783 = vmatprep.subr.mxu0 0.0
    %784 = vmatpush1.msra.mxu0 0.0
    %785 = vmatprep.subr.mxu0 0.0
    %786 = vmatpush1.msra.mxu0 0.0
    %787 = vmatprep.subr.mxu0 0.0
    %788 = vmatpush1.msra.mxu0 0.0
    %789 = vmatprep.subr.mxu0 0.0
    %790 = vmatpush1.msra.mxu0 0.0
    %791 = vmatprep.subr.mxu0 0.0
    %792 = vmatpush1.msra.mxu0 0.0
    %793 = vmatprep.subr.mxu0 0.0
    %794 = vmatpush1.msra.mxu0 0.0
    %795 = vmatprep.subr.mxu0 0.0
    %796 = vmatpush1.msra.mxu0 0.0
    %797 = vmatprep.subr.mxu0 0.0
    %798 = vmatpush1.msra.mxu0 0.0
    %799 = vmatprep.subr.mxu0 0.0
    %800 = vmatpush1.msra.mxu0 0.0
    %801 = vmatprep.mubr.f32.mxu0 0.0
    %802 = vmatmul.mubr.f32.gmra.mrb[0].mxu0 %v735
    %v803 = vpop.f32.mrb[0].mxu0
    %v804 = vadd.f32 0.0, %v803
    %v805 = vpop.f32.mrb[0].mxu0
    %v806 = vadd.f32 0.0, %v805
    %807 = vdwg.mxu0
    %v808 = vadd.f32 %v732, %v804
    %v809 = vadd.f32 %v733, %v806
    %v810 = vxor.u32 %v808, 2147483648
    %v811 = vxor.u32 %v809, 2147483648
    %v812 = vmul.f32 %v810, 1.442695
    %v813 = vpow.pop %v812
    %v814 = vmul.f32 %v811, 1.442695
    %v815 = vpow.pop %v814
    %v816 = vadd.f32 %v813, 1.0
    %v817 = vadd.f32 %v815, 1.0
    %v818 = vrcp.pop %v816
    %v819 = vmul.f32 1.0, %v818
    %v820 = vrcp.pop %v817
    %v821 = vmul.f32 1.0, %v820
    %v822 = vtanh.pop %v809
    %v823 = vmul.f32 %v819, %v720
    %825 = vrot.lane.b32.xlu0 %v822, 64
    %v826 = vpop.permute.xlu0 %825
    %v828 = vmul.f32 %v819, %v826
    %830 = vrot.lane.b32.xlu0 %v828, 64
    %v831 = vpop.permute.xlu0 %830
    %v833 = vadd.f32 %v823, %v831
    %v834 = vtanh.pop %v833
    %836 = vrot.lane.b32.xlu0 %v834, 64
    %v837 = vpop.permute.xlu0 %836
    %v839 = vmul.f32 %v821, %v837
    %s840 = scalar_lea.vmem [#allocation6], 32
    %v841 = vld [vmem:[%s840] sm:$0xff]
    %v842 = vsub.f32 %v839, %v841
    %v843 = vmax.f32 %v730, %v842
    %s844 = scalar_lea.vmem [#allocation2], 80
    %v845 = vld [vmem:[%s844] sm:$0xff]
    %v846 = vld [vmem:[%s844 + $0x8] sm:$0xff]
    %v848 = vsel %vm112, %v839, 0
    %850 = vmatprep.subr.mxu0 %v267
    %851 = vmatpush1.msra.mxu0 %v266
    %852 = vmatprep.subr.mxu0 %v269
    %853 = vmatpush1.msra.mxu0 %v268
    %854 = vmatprep.subr.mxu0 %v271
    %855 = vmatpush1.msra.mxu0 %v270
    %856 = vmatprep.subr.mxu0 %v273
    %857 = vmatpush1.msra.mxu0 %v272
    %858 = vmatprep.subr.mxu0 %v275
    %859 = vmatpush1.msra.mxu0 %v274
    %860 = vmatprep.subr.mxu0 %v277
    %861 = vmatpush1.msra.mxu0 %v276
    %862 = vmatprep.subr.mxu0 %v279
    %863 = vmatpush1.msra.mxu0 %v278
    %864 = vmatprep.subr.mxu0 %v281
    %865 = vmatpush1.msra.mxu0 %v280
    %866 = vmatprep.subr.mxu0 0.0
    %867 = vmatpush1.msra.mxu0 0.0
    %868 = vmatprep.subr.mxu0 0.0
    %869 = vmatpush1.msra.mxu0 0.0
    %870 = vmatprep.subr.mxu0 0.0
    %871 = vmatpush1.msra.mxu0 0.0
    %872 = vmatprep.subr.mxu0 0.0
    %873 = vmatpush1.msra.mxu0 0.0
    %874 = vmatprep.subr.mxu0 0.0
    %875 = vmatpush1.msra.mxu0 0.0
    %876 = vmatprep.subr.mxu0 0.0
    %877 = vmatpush1.msra.mxu0 0.0
    %878 = vmatprep.subr.mxu0 0.0
    %879 = vmatpush1.msra.mxu0 0.0
    %880 = vmatprep.subr.mxu0 0.0
    %881 = vmatpush1.msra.mxu0 0.0
    %882 = vmatprep.subr.mxu0 0.0
    %883 = vmatpush1.msra.mxu0 0.0
    %884 = vmatprep.subr.mxu0 0.0
    %885 = vmatpush1.msra.mxu0 0.0
    %886 = vmatprep.subr.mxu0 0.0
    %887 = vmatpush1.msra.mxu0 0.0
    %888 = vmatprep.subr.mxu0 0.0
    %889 = vmatpush1.msra.mxu0 0.0
    %890 = vmatprep.subr.mxu0 0.0
    %891 = vmatpush1.msra.mxu0 0.0
    %892 = vmatprep.subr.mxu0 0.0
    %893 = vmatpush1.msra.mxu0 0.0
    %894 = vmatprep.subr.mxu0 0.0
    %895 = vmatpush1.msra.mxu0 0.0
    %896 = vmatprep.subr.mxu0 0.0
    %897 = vmatpush1.msra.mxu0 0.0
    %898 = vmatprep.subr.mxu0 0.0
    %899 = vmatpush1.msra.mxu0 0.0
    %900 = vmatprep.subr.mxu0 0.0
    %901 = vmatpush1.msra.mxu0 0.0
    %902 = vmatprep.subr.mxu0 0.0
    %903 = vmatpush1.msra.mxu0 0.0
    %904 = vmatprep.subr.mxu0 0.0
    %905 = vmatpush1.msra.mxu0 0.0
    %906 = vmatprep.subr.mxu0 0.0
    %907 = vmatpush1.msra.mxu0 0.0
    %908 = vmatprep.subr.mxu0 0.0
    %909 = vmatpush1.msra.mxu0 0.0
    %910 = vmatprep.subr.mxu0 0.0
    %911 = vmatpush1.msra.mxu0 0.0
    %912 = vmatprep.subr.mxu0 0.0
    %913 = vmatpush1.msra.mxu0 0.0
    %914 = vmatprep.mubr.f32.mxu0 0.0
    %915 = vmatmul.mubr.f32.gmra.mrb[0].mxu0 %v848
    %v916 = vpop.f32.mrb[0].mxu0
    %v917 = vadd.f32 0.0, %v916
    %v918 = vpop.f32.mrb[0].mxu0
    %v919 = vadd.f32 0.0, %v918
    %920 = vdwg.mxu0
    %v921 = vadd.f32 %v845, %v917
    %v922 = vadd.f32 %v846, %v919
    %v923 = vxor.u32 %v921, 2147483648
    %v924 = vxor.u32 %v922, 2147483648
    %v925 = vmul.f32 %v923, 1.442695
    %v926 = vpow.pop %v925
    %v927 = vmul.f32 %v924, 1.442695
    %v928 = vpow.pop %v927
    %v929 = vadd.f32 %v926, 1.0
    %v930 = vadd.f32 %v928, 1.0
    %v931 = vrcp.pop %v929
    %v932 = vmul.f32 1.0, %v931
    %v933 = vrcp.pop %v930
    %v934 = vmul.f32 1.0, %v933
    %v935 = vtanh.pop %v922
    %v936 = vmul.f32 %v932, %v833
    %938 = vrot.lane.b32.xlu0 %v935, 64
    %v939 = vpop.permute.xlu0 %938
    %v941 = vmul.f32 %v932, %v939
    %943 = vrot.lane.b32.xlu0 %v941, 64
    %v944 = vpop.permute.xlu0 %943
    %v946 = vadd.f32 %v936, %v944
    %v947 = vtanh.pop %v946
    %949 = vrot.lane.b32.xlu0 %v947, 64
    %v950 = vpop.permute.xlu0 %949
    %v952 = vmul.f32 %v934, %v950
    %s953 = scalar_lea.vmem [#allocation6], 40
    %v954 = vld [vmem:[%s953] sm:$0xff]
    %v955 = vsub.f32 %v952, %v954
    %v956 = vmax.f32 %v843, %v955
    %s957 = scalar_lea.vmem [#allocation2], 96
    %v958 = vld [vmem:[%s957] sm:$0xff]
    %v959 = vld [vmem:[%s957 + $0x8] sm:$0xff]
    %v961 = vsel %vm112, %v952, 0
    %963 = vmatprep.subr.mxu0 %v267
    %964 = vmatpush1.msra.mxu0 %v266
    %965 = vmatprep.subr.mxu0 %v269
    %966 = vmatpush1.msra.mxu0 %v268
    %967 = vmatprep.subr.mxu0 %v271
    %968 = vmatpush1.msra.mxu0 %v270
    %969 = vmatprep.subr.mxu0 %v273
    %970 = vmatpush1.msra.mxu0 %v272
    %971 = vmatprep.subr.mxu0 %v275
    %972 = vmatpush1.msra.mxu0 %v274
    %973 = vmatprep.subr.mxu0 %v277
    %974 = vmatpush1.msra.mxu0 %v276
    %975 = vmatprep.subr.mxu0 %v279
    %976 = vmatpush1.msra.mxu0 %v278
    %977 = vmatprep.subr.mxu0 %v281
    %978 = vmatpush1.msra.mxu0 %v280
    %979 = vmatprep.subr.mxu0 0.0
    %980 = vmatpush1.msra.mxu0 0.0
    %981 = vmatprep.subr.mxu0 0.0
    %982 = vmatpush1.msra.mxu0 0.0
    %983 = vmatprep.subr.mxu0 0.0
    %984 = vmatpush1.msra.mxu0 0.0
    %985 = vmatprep.subr.mxu0 0.0
    %986 = vmatpush1.msra.mxu0 0.0
    %987 = vmatprep.subr.mxu0 0.0
    %988 = vmatpush1.msra.mxu0 0.0
    %989 = vmatprep.subr.mxu0 0.0
    %990 = vmatpush1.msra.mxu0 0.0
    %991 = vmatprep.subr.mxu0 0.0
    %992 = vmatpush1.msra.mxu0 0.0
    %993 = vmatprep.subr.mxu0 0.0
    %994 = vmatpush1.msra.mxu0 0.0
    %995 = vmatprep.subr.mxu0 0.0
    %996 = vmatpush1.msra.mxu0 0.0
    %997 = vmatprep.subr.mxu0 0.0
    %998 = vmatpush1.msra.mxu0 0.0
    %999 = vmatprep.subr.mxu0 0.0
    %1000 = vmatpush1.msra.mxu0 0.0
    %1001 = vmatprep.subr.mxu0 0.0
    %1002 = vmatpush1.msra.mxu0 0.0
    %1003 = vmatprep.subr.mxu0 0.0
    %1004 = vmatpush1.msra.mxu0 0.0
    %1005 = vmatprep.subr.mxu0 0.0
    %1006 = vmatpush1.msra.mxu0 0.0
    %1007 = vmatprep.subr.mxu0 0.0
    %1008 = vmatpush1.msra.mxu0 0.0
    %1009 = vmatprep.subr.mxu0 0.0
    %1010 = vmatpush1.msra.mxu0 0.0
    %1011 = vmatprep.subr.mxu0 0.0
    %1012 = vmatpush1.msra.mxu0 0.0
    %1013 = vmatprep.subr.mxu0 0.0
    %1014 = vmatpush1.msra.mxu0 0.0
    %1015 = vmatprep.subr.mxu0 0.0
    %1016 = vmatpush1.msra.mxu0 0.0
    %1017 = vmatprep.subr.mxu0 0.0
    %1018 = vmatpush1.msra.mxu0 0.0
    %1019 = vmatprep.subr.mxu0 0.0
    %1020 = vmatpush1.msra.mxu0 0.0
    %1021 = vmatprep.subr.mxu0 0.0
    %1022 = vmatpush1.msra.mxu0 0.0
    %1023 = vmatprep.subr.mxu0 0.0
    %1024 = vmatpush1.msra.mxu0 0.0
    %1025 = vmatprep.subr.mxu0 0.0
    %1026 = vmatpush1.msra.mxu0 0.0
    %1027 = vmatprep.mubr.f32.mxu0 0.0
    %1028 = vmatmul.mubr.f32.gmra.mrb[0].mxu0 %v961
    %v1029 = vpop.f32.mrb[0].mxu0
    %v1030 = vadd.f32 0.0, %v1029
    %v1031 = vpop.f32.mrb[0].mxu0
    %v1032 = vadd.f32 0.0, %v1031
    %1033 = vdwg.mxu0
    %v1034 = vadd.f32 %v958, %v1030
    %v1035 = vadd.f32 %v959, %v1032
    %v1036 = vxor.u32 %v1034, 2147483648
    %v1037 = vxor.u32 %v1035, 2147483648
    %v1038 = vmul.f32 %v1036, 1.442695
    %v1039 = vpow.pop %v1038
    %v1040 = vmul.f32 %v1037, 1.442695
    %v1041 = vpow.pop %v1040
    %v1042 = vadd.f32 %v1039, 1.0
    %v1043 = vadd.f32 %v1041, 1.0
    %v1044 = vrcp.pop %v1042
    %v1045 = vmul.f32 1.0, %v1044
    %v1046 = vrcp.pop %v1043
    %v1047 = vmul.f32 1.0, %v1046
    %v1048 = vtanh.pop %v1035
    %v1049 = vmul.f32 %v1045, %v946
    %1051 = vrot.lane.b32.xlu0 %v1048, 64
    %v1052 = vpop.permute.xlu0 %1051
    %v1054 = vmul.f32 %v1045, %v1052
    %1056 = vrot.lane.b32.xlu0 %v1054, 64
    %v1057 = vpop.permute.xlu0 %1056
    %v1059 = vadd.f32 %v1049, %v1057
    %v1060 = vtanh.pop %v1059
    %1062 = vrot.lane.b32.xlu0 %v1060, 64
    %v1063 = vpop.permute.xlu0 %1062
    %v1065 = vmul.f32 %v1047, %v1063
    %s1066 = scalar_lea.vmem [#allocation6], 48
    %v1067 = vld [vmem:[%s1066] sm:$0xff]
    %v1068 = vsub.f32 %v1065, %v1067
    %v1069 = vmax.f32 %v956, %v1068
    %s1070 = scalar_lea.vmem [#allocation2], 112
    %v1071 = vld [vmem:[%s1070] sm:$0xff]
    %v1072 = vld [vmem:[%s1070 + $0x8] sm:$0xff]
    %v1074 = vsel %vm112, %v1065, 0
    %1076 = vmatprep.subr.mxu0 %v267
    %1077 = vmatpush1.msra.mxu0 %v266
    %1078 = vmatprep.subr.mxu0 %v269
    %1079 = vmatpush1.msra.mxu0 %v268
    %1080 = vmatprep.subr.mxu0 %v271
    %1081 = vmatpush1.msra.mxu0 %v270
    %1082 = vmatprep.subr.mxu0 %v273
    %1083 = vmatpush1.msra.mxu0 %v272
    %1084 = vmatprep.subr.mxu0 %v275
    %1085 = vmatpush1.msra.mxu0 %v274
    %1086 = vmatprep.subr.mxu0 %v277
    %1087 = vmatpush1.msra.mxu0 %v276
    %1088 = vmatprep.subr.mxu0 %v279
    %1089 = vmatpush1.msra.mxu0 %v278
    %1090 = vmatprep.subr.mxu0 %v281
    %1091 = vmatpush1.msra.mxu0 %v280
    %1092 = vmatprep.subr.mxu0 0.0
    %1093 = vmatpush1.msra.mxu0 0.0
    %1094 = vmatprep.subr.mxu0 0.0
    %1095 = vmatpush1.msra.mxu0 0.0
    %1096 = vmatprep.subr.mxu0 0.0
    %1097 = vmatpush1.msra.mxu0 0.0
    %1098 = vmatprep.subr.mxu0 0.0
    %1099 = vmatpush1.msra.mxu0 0.0
    %1100 = vmatprep.subr.mxu0 0.0
    %1101 = vmatpush1.msra.mxu0 0.0
    %1102 = vmatprep.subr.mxu0 0.0
    %1103 = vmatpush1.msra.mxu0 0.0
    %1104 = vmatprep.subr.mxu0 0.0
    %1105 = vmatpush1.msra.mxu0 0.0
    %1106 = vmatprep.subr.mxu0 0.0
    %1107 = vmatpush1.msra.mxu0 0.0
    %1108 = vmatprep.subr.mxu0 0.0
    %1109 = vmatpush1.msra.mxu0 0.0
    %1110 = vmatprep.subr.mxu0 0.0
    %1111 = vmatpush1.msra.mxu0 0.0
    %1112 = vmatprep.subr.mxu0 0.0
    %1113 = vmatpush1.msra.mxu0 0.0
    %1114 = vmatprep.subr.mxu0 0.0
    %1115 = vmatpush1.msra.mxu0 0.0
    %1116 = vmatprep.subr.mxu0 0.0
    %1117 = vmatpush1.msra.mxu0 0.0
    %1118 = vmatprep.subr.mxu0 0.0
    %1119 = vmatpush1.msra.mxu0 0.0
    %1120 = vmatprep.subr.mxu0 0.0
    %1121 = vmatpush1.msra.mxu0 0.0
    %1122 = vmatprep.subr.mxu0 0.0
    %1123 = vmatpush1.msra.mxu0 0.0
    %1124 = vmatprep.subr.mxu0 0.0
    %1125 = vmatpush1.msra.mxu0 0.0
    %1126 = vmatprep.subr.mxu0 0.0
    %1127 = vmatpush1.msra.mxu0 0.0
    %1128 = vmatprep.subr.mxu0 0.0
    %1129 = vmatpush1.msra.mxu0 0.0
    %1130 = vmatprep.subr.mxu0 0.0
    %1131 = vmatpush1.msra.mxu0 0.0
    %1132 = vmatprep.subr.mxu0 0.0
    %1133 = vmatpush1.msra.mxu0 0.0
    %1134 = vmatprep.subr.mxu0 0.0
    %1135 = vmatpush1.msra.mxu0 0.0
    %1136 = vmatprep.subr.mxu0 0.0
    %1137 = vmatpush1.msra.mxu0 0.0
    %1138 = vmatprep.subr.mxu0 0.0
    %1139 = vmatpush1.msra.mxu0 0.0
    %1140 = vmatprep.mubr.f32.mxu0 0.0
    %1141 = vmatmul.mubr.f32.gmra.mrb[0].mxu0 %v1074
    %v1142 = vpop.f32.mrb[0].mxu0
    %v1143 = vadd.f32 0.0, %v1142
    %v1144 = vpop.f32.mrb[0].mxu0
    %v1145 = vadd.f32 0.0, %v1144
    %1146 = vdwg.mxu0
    %v1147 = vadd.f32 %v1071, %v1143
    %v1148 = vadd.f32 %v1072, %v1145
    %v1149 = vxor.u32 %v1147, 2147483648
    %v1150 = vxor.u32 %v1148, 2147483648
    %v1151 = vmul.f32 %v1149, 1.442695
    %v1152 = vpow.pop %v1151
    %v1153 = vmul.f32 %v1150, 1.442695
    %v1154 = vpow.pop %v1153
    %v1155 = vadd.f32 %v1152, 1.0
    %v1156 = vadd.f32 %v1154, 1.0
    %v1157 = vrcp.pop %v1155
    %v1158 = vmul.f32 1.0, %v1157
    %v1159 = vrcp.pop %v1156
    %v1160 = vmul.f32 1.0, %v1159
    %v1161 = vtanh.pop %v1148
    %v1162 = vmul.f32 %v1158, %v1059
    %1164 = vrot.lane.b32.xlu0 %v1161, 64
    %v1165 = vpop.permute.xlu0 %1164
    %v1167 = vmul.f32 %v1158, %v1165
    %1169 = vrot.lane.b32.xlu0 %v1167, 64
    %v1170 = vpop.permute.xlu0 %1169
    %v1172 = vadd.f32 %v1162, %v1170
    %v1173 = vtanh.pop %v1172
    %1175 = vrot.lane.b32.xlu0 %v1173, 64
    %v1176 = vpop.permute.xlu0 %1175
    %v1178 = vmul.f32 %v1160, %v1176
    %s1179 = scalar_lea.vmem [#allocation6], 56
    %v1180 = vld [vmem:[%s1179] sm:$0xff]
    %v1181 = vsub.f32 %v1178, %v1180
    %v1182 = vmax.f32 %v1069, %v1181
    %1183 = vst.msk [vmem:[#allocation11] sm:$0xff] %vm112, %v1182
    // Predicated region
    $region38: #{tpu_custom_call.1} parent=1 // pred_check
      _
    $region39: #{tpu_custom_call.1} parent=1 // pred_check_branch
      %1185 = sbr.rel (0) target = $region41
    $region40: #{tpu_custom_call.1} parent=1 // pred_region
      %s1187 = ssub.s32 128, 128
      %1188 = vsyncadd [#allocation5], %s1187
      %s1190 = sshll.u32 [#allocation11], 4
      %s1191 = int_to_ptr.vmem [resolvable:$true] %s1190
      %1193 = dma.vmem_to_hbm [thread:$0]  %s1191, 128, %s5, [#allocation5]
    $region41: #{tpu_custom_call.1} parent=1 // pred_fallthru
      _
    // Predicated region
    $region42: #{tpu_custom_call.1} parent=1 // pred_check
      _
    $region43: #{tpu_custom_call.1} parent=1 // pred_check_branch
      %1195 = sbr.rel (0) target = $region45
    $region44: #{tpu_custom_call.1} parent=1 // pred_region
      %1196 = dma.done [#allocation5], 128
    $region45: #{tpu_custom_call.1} parent=1 // pred_fallthru
      _
    %1197 = vsyncpa [#allocation4], 1
    %1198 = vsyncpa [#allocation7], 1
    %1199 = vsyncpa [#allocation10], 1
    %1200 = vsyncpa [#allocation5], 1

</llo_original>
